<compile_context>
chip_gen: v6e
topology: v6e:2x2x1
jax: 0.10.0
libtpu: 0.0.40
codegen_flags: <defaults>
</compile_context>

<pallas_src>
import numpy as np
import jax
import jax.numpy as jnp
from jax.experimental import pallas as pl
from jax.experimental.pallas import tpu as pltpu

KRCNN_NUM_KEYPOINTS = 17
KRCNN_DECONV_KERNEL = 4
KRCNN_USE_DECONV = False          # TODO(synk): optional pre-deconv+relu branch disabled by this config
KRCNN_USE_DECONV_OUTPUT = True
KRCNN_UP_SCALE = 2
KRCNN_CONV_INIT = "GaussianFill"  # normal(std=0.001)

# Phase tap map for a stride-2, k=4, pad=1 transposed conv:
#   output row 2*i+r is fed by input rows (i-1+d) for d in {0,1} using kernel
#   row _KHMAP[r][d].
_KHMAP = ((3, 1), (2, 0))


def _round_up(x, m):
    return -(-x // m) * m


# --------------------- stage 1 Pallas kernel: matmul + bias (MXU) -----------

def _matmul_bias_kernel(x_ref, w_ref, b_ref, o_ref):
    o_ref[...] = (
        jnp.dot(x_ref[...], w_ref[...], preferred_element_type=jnp.float32)
        + b_ref[...]
    )


def matmul_bias_pallas(x, w, b, tm=512):
    """(M, K) @ (K, N) + b[N]; bf16 operands, f32 accumulate, M-parallel grid."""
    M, K = x.shape
    _, Ncol = w.shape
    Kp = _round_up(K, 128)
    Np = _round_up(Ncol, 128)
    tm = min(tm, _round_up(M, 128))   # don't over-pad tiny problems
    Mp = _round_up(M, tm)

    xp = jnp.pad(x, ((0, Mp - M), (0, Kp - K))).astype(jnp.bfloat16)
    wp = jnp.pad(w, ((0, Kp - K), (0, Np - Ncol))).astype(jnp.bfloat16)
    bp = jnp.pad(b, (0, Np - Ncol)).astype(jnp.float32).reshape(1, Np)

    out = pl.pallas_call(
        _matmul_bias_kernel,
        out_shape=jax.ShapeDtypeStruct((Mp, Np), jnp.float32),
        grid=(Mp // tm,),
        in_specs=[
            pl.BlockSpec((tm, Kp), lambda i: (i, 0)),
            pl.BlockSpec((Kp, Np), lambda i: (0, 0)),   # weight resident
            pl.BlockSpec((1, Np), lambda i: (0, 0)),    # bias resident
        ],
        out_specs=pl.BlockSpec((tm, Np), lambda i: (i, 0)),
        compiler_params=pltpu.CompilerParams(
            dimension_semantics=("parallel",),
            vmem_limit_bytes=32 * 1024 * 1024,
        ),
    )(xp, wp, bp)
    return out[:M, :Ncol]


# ------------- stage 1: ConvTranspose2d(Cin, Cout, 4, s=2, p=1) -------------
# Sub-pixel / phase decomposition: each of the 4 output phases is a 2x2
# stride-1 conv of the *un-dilated* input, and all 4 phases are computed in a
# single matmul whose output columns are (phase, channel).

def deconv_classify(x, w, b, tm=512):
    """x: (N, Cin, H, W) NCHW; w: (Cin, Cout, 4, 4); b: (Cout,).
    Returns the (N, 2H, 2W, Cout) NHWC heatmap."""
    assert KRCNN_DECONV_KERNEL == 4
    N, Cin, H, W = x.shape
    Cout = w.shape[1]

    # NHWC + one-pixel zero border (transposed-conv boundary handling)
    xh = jnp.transpose(x, (0, 2, 3, 1))
    xpad = jnp.pad(xh, ((0, 0), (1, 1), (1, 1), (0, 0)))

    # Anchor-based 2x2 patches: K = 4*Cin (no zero-dilated im2col).
    taps = [xpad[:, dy:dy + H + 1, dx:dx + W + 1, :]
            for dy in range(2) for dx in range(2)]
    X = jnp.concatenate(taps, axis=-1).reshape(N * (H + 1) * (W + 1), 4 * Cin)

    # Weight matrix: column block (ry, rx) holds the 4 kernel taps that phase uses.
    blocks = []
    for ry in range(2):
        for rx in range(2):
            cols = [w[:, :, _KHMAP[ry][dy], _KHMAP[rx][dx]]
                    for dy in range(2) for dx in range(2)]        # each (Cin, Cout)
            blocks.append(jnp.concatenate(cols, axis=0))          # (4*Cin, Cout)
    Wm = jnp.concatenate(blocks, axis=1)                          # (4*Cin, 4*Cout)
    bias = jnp.tile(b, 4)                                         # (4*Cout,)

    Y = matmul_bias_pallas(X, Wm, bias, tm=tm)                    # (M0, 4*Cout) f32
    Y = Y.reshape(N, H + 1, W + 1, 4, Cout)

    # Pixel-shuffle the 4 phases back into the heatmap (pure XLA layout glue).
    rows = []
    for ry in range(2):
        rows.append(jnp.stack(
            [Y[:, ry:ry + H, rx:rx + W, 2 * ry + rx, :] for rx in range(2)],
            axis=3))                                              # (N, H, W, 2, Cout)
    hm = jnp.stack(rows, axis=2)                                  # (N, H, 2, W, 2, Cout)
    return hm.reshape(N, 2 * H, 2 * W, Cout)


# ---------------- stage 2: fixed bilinear 2x upsample (VPU taps) ------------
# mynn.BilinearInterpolation2d == ConvTranspose2d(C, C, 4, s=2, p=1) with a
# fixed bilinear kernel that is diagonal across channels.  Per output pixel it
# is just 4 fixed-weight taps of neighbouring heatmap pixels -> VPU, not MXU.

def bilinear_upsample2x_nhwc_to_nchw(hm):
    """hm: (N, Hh, Wh, C) NHWC; returns (N, C, 2*Hh, 2*Wh) NCHW."""
    N, Hh, Wh, C = hm.shape

    ks = 2 * KRCNN_UP_SCALE
    factor = (ks + 1) // 2
    center = factor - 1 if ks % 2 == 1 else factor - 0.5
    bil1d = 1.0 - np.abs(np.arange(ks) - center) / factor         # [0.25,0.75,0.75,0.25]
    coef = tuple(tuple(float(bil1d[_KHMAP[r][d]]) for d in range(2)) for r in range(2))

    hmp = jnp.pad(hm, ((0, 0), (1, 1), (1, 1), (0, 0)))           # zero border

    def kernel(hm_ref, o00, o01, o10, o11):
        outs = ((o00, o01), (o10, o11))
        for ry in range(2):
            for rx in range(2):
                acc = None
                for dy in range(2):
                    for dx in range(2):
                        c = coef[ry][dy] * coef[rx][dx]
                        t = c * hm_ref[0, ry + dy:ry + dy + Hh,
                                       rx + dx:rx + dx + Wh, :]
                        acc = t if acc is None else acc + t
                outs[ry][rx][0] = acc

    phase = jax.ShapeDtypeStruct((N, Hh, Wh, C), jnp.float32)
    p00, p01, p10, p11 = pl.pallas_call(
        kernel,
        out_shape=(phase, phase, phase, phase),
        grid=(N,),
        in_specs=[pl.BlockSpec((1, Hh + 2, Wh + 2, C), lambda n: (n, 0, 0, 0))],
        out_specs=[pl.BlockSpec((1, Hh, Wh, C), lambda n: (n, 0, 0, 0))] * 4,
        compiler_params=pltpu.CompilerParams(dimension_semantics=("parallel",)),
    )(hmp)

    up = jnp.stack([jnp.stack([p00, p01], axis=3),
                    jnp.stack([p10, p11], axis=3)], axis=2)        # (N, Hh, 2, Wh, 2, C)
    up = up.reshape(N, 2 * Hh, 2 * Wh, C)
    return jnp.transpose(up, (0, 3, 1, 2))                         # NCHW (module contract)


# --------------------------- module parameters ------------------------------

def init_keypoint_outputs_params(dim_in, key):
    params = {}
    # classify: ConvTranspose2d(dim_in, NUM_KEYPOINTS, 4, stride=2, padding=1)
    # GaussianFill init: normal(std=0.001); bias = 0.
    params["classify_w"] = 0.001 * jax.random.normal(
        key,
        (dim_in, KRCNN_NUM_KEYPOINTS, KRCNN_DECONV_KERNEL, KRCNN_DECONV_KERNEL),
        dtype=jnp.float32)
    params["classify_b"] = jnp.zeros((KRCNN_NUM_KEYPOINTS,), jnp.float32)

    # upsample: fixed (non-learned) bilinear deconv kernel (kept for the reference check)
    ks = 2 * KRCNN_UP_SCALE
    factor = (ks + 1) // 2
    center = factor - 1 if ks % 2 == 1 else factor - 0.5
    og = np.ogrid[:ks, :ks]
    bil = ((1 - abs(og[0] - center) / factor) *
           (1 - abs(og[1] - center) / factor)).astype(np.float32)
    kern = np.zeros(
        (KRCNN_NUM_KEYPOINTS, KRCNN_NUM_KEYPOINTS, ks, ks), np.float32)
    kern[range(KRCNN_NUM_KEYPOINTS), range(KRCNN_NUM_KEYPOINTS), :, :] = bil
    params["upsample_w"] = jnp.asarray(kern)
    params["upsample_b"] = jnp.zeros((KRCNN_NUM_KEYPOINTS,), jnp.float32)
    return params


def keypoint_outputs_forward(x, params):
    # (USE_DECONV branch is False in this config: no pre-deconv + relu.)
    hm = deconv_classify(x, params["classify_w"], params["classify_b"])  # NHWC heatmap
    if KRCNN_UP_SCALE > 1:
        assert KRCNN_UP_SCALE == 2
        # TODO(synk): fusing the bilinear taps into the matmul epilogue would save
        # one HBM round trip of the heatmap but needs spatial halos across M tiles.
        return bilinear_upsample2x_nhwc_to_nchw(hm)
    return jnp.transpose(hm, (0, 3, 1, 2))


# ------------------------------ reference -----------------------------------

def _ref_conv_transpose2d(x, w, b, stride, padding):
    kH, kW = w.shape[2], w.shape[3]
    w_flip = jnp.transpose(w[:, :, ::-1, ::-1], (1, 0, 2, 3))  # (Cout,Cin,kH,kW)
    y = jax.lax.conv_general_dilated(
        x, w_flip, window_strides=(1, 1),
        padding=((kH - 1 - padding,) * 2, (kW - 1 - padding,) * 2),
        lhs_dilation=(stride, stride),
        dimension_numbers=("NCHW", "OIHW", "NCHW"))
    return y + b.reshape(1, -1, 1, 1)


if __name__ == "__main__":
    key = jax.random.PRNGKey(0)
    kx, kw = jax.random.split(key)

    N, dim_in, H, W = 2, 32, 8, 8
    x = jax.random.normal(kx, (N, dim_in, H, W), dtype=jnp.float32)
    params = init_keypoint_outputs_params(dim_in, kw)

    fwd = jax.jit(keypoint_outputs_forward)
    out = jax.block_until_ready(fwd(x, params))
    assert out.shape == (N, KRCNN_NUM_KEYPOINTS,
                         2 * KRCNN_UP_SCALE * H, 2 * KRCNN_UP_SCALE * W), out.shape

    # numeric check against an independent lax reference (tolerance accounts for
    # the bf16 matmul operands; values are O(1e-2))
    ref = _ref_conv_transpose2d(x, params["classify_w"], params["classify_b"],
                                2, int(KRCNN_DECONV_KERNEL / 2 - 1))
    ref = _ref_conv_transpose2d(ref, params["upsample_w"], params["upsample_b"],
                                KRCNN_UP_SCALE, KRCNN_UP_SCALE // 2)
    np.testing.assert_allclose(np.asarray(out), np.asarray(ref),
                               rtol=2e-2, atol=1e-3)

    print("KERNEL_OK")
</pallas_src>

<mosaic_0001>
module attributes {stable_mosaic.version = 11 : i64} {
  func.func @_matmul_bias_kernel(%arg0: i32, %arg1: memref<256x128xbf16, #tpu.memory_space<vmem>>, %arg2: memref<128x128xbf16, #tpu.memory_space<vmem>>, %arg3: memref<1x128xf32, #tpu.memory_space<vmem>>, %arg4: memref<256x128xf32, #tpu.memory_space<vmem>>) attributes {dimension_semantics = [#tpu.dimension_semantics<parallel>], iteration_bounds = array<i64: 1>, scalar_prefetch = 0 : i64, scratch_operands = 0 : i64, tpu.core_type = #tpu.core_type<tc>, window_params = [{transform_indices = @transform_0, window_bounds = array<i64: 256, 128>}, {pipeline_mode = #tpu.pipeline_mode<synchronous>, transform_indices = @transform_1, window_bounds = array<i64: 128, 128>}, {pipeline_mode = #tpu.pipeline_mode<synchronous>, transform_indices = @transform_2, window_bounds = array<i64: 1, 128>}, {transform_indices = @transform_3, window_bounds = array<i64: 256, 128>}]} {
    %c0 = arith.constant 0 : index
    %c0_0 = arith.constant 0 : index
    %0 = vector.load %arg1[%c0, %c0_0] : memref<256x128xbf16, #tpu.memory_space<vmem>>, vector<256x128xbf16>
    %c0_1 = arith.constant 0 : index
    %c0_2 = arith.constant 0 : index
    %1 = vector.load %arg2[%c0_1, %c0_2] : memref<128x128xbf16, #tpu.memory_space<vmem>>, vector<128x128xbf16>
    %cst = arith.constant dense<0.000000e+00> : vector<256x128xf32>
    %2 = tpu.matmul %0, %1, %cst {dimension_numbers = #tpu.dot_dimension_numbers<[1], [0], [0], [1], [0, 0, 1, 1], [], []>} : vector<256x128xbf16>, vector<128x128xbf16>, vector<256x128xf32> -> vector<256x128xf32>
    %c0_3 = arith.constant 0 : index
    %c0_4 = arith.constant 0 : index
    %3 = vector.load %arg3[%c0_3, %c0_4] : memref<1x128xf32, #tpu.memory_space<vmem>>, vector<1x128xf32>
    %4 = vector.broadcast %3 : vector<1x128xf32> to vector<256x128xf32>
    %5 = arith.addf %2, %4 : vector<256x128xf32>
    %c0_5 = arith.constant 0 : index
    %c0_6 = arith.constant 0 : index
    %6 = vector.load %arg4[%c0_5, %c0_6] : memref<256x128xf32, #tpu.memory_space<vmem>>, vector<256x128xf32>
    tpu.vector_store %arg4[%c0_5, %c0_6], %5 {strides = array<i32>} : memref<256x128xf32, #tpu.memory_space<vmem>>, vector<256x128xf32>,
    return
  }
  func.func @transform_0(%arg0: i32) -> (i32, i32) {
    %c0_i32 = arith.constant 0 : i32
    %c0_i32_0 = arith.constant 0 : i32
    return %arg0, %c0_i32 : i32, i32
  }
  func.func @transform_1(%arg0: i32) -> (i32, i32) {
    %c0_i32 = arith.constant 0 : i32
    %c0_i32_0 = arith.constant 0 : i32
    %c0_i32_1 = arith.constant 0 : i32
    return %c0_i32, %c0_i32_0 : i32, i32
  }
  func.func @transform_2(%arg0: i32) -> (i32, i32) {
    %c0_i32 = arith.constant 0 : i32
    %c0_i32_0 = arith.constant 0 : i32
    %c0_i32_1 = arith.constant 0 : i32
    return %c0_i32, %c0_i32_0 : i32, i32
  }
  func.func @transform_3(%arg0: i32) -> (i32, i32) {
    %c0_i32 = arith.constant 0 : i32
    %c0_i32_0 = arith.constant 0 : i32
    return %arg0, %c0_i32 : i32, i32
  }
}

module attributes {stable_mosaic.version = 11 : i64} {
  func.func @kernel(%arg0: i32, %arg1: memref<1x18x18x17xf32, #tpu.memory_space<vmem>>, %arg2: memref<1x16x16x17xf32, #tpu.memory_space<vmem>>, %arg3: memref<1x16x16x17xf32, #tpu.memory_space<vmem>>, %arg4: memref<1x16x16x17xf32, #tpu.memory_space<vmem>>, %arg5: memref<1x16x16x17xf32, #tpu.memory_space<vmem>>) attributes {dimension_semantics = [#tpu.dimension_semantics<parallel>], iteration_bounds = array<i64: 2>, scalar_prefetch = 0 : i64, scratch_operands = 0 : i64, tpu.core_type = #tpu.core_type<tc>, window_params = [{transform_indices = @transform_0, window_bounds = array<i64: 1, 18, 18, 17>}, {transform_indices = @transform_1, window_bounds = array<i64: 1, 16, 16, 17>}, {transform_indices = @transform_2, window_bounds = array<i64: 1, 16, 16, 17>}, {transform_indices = @transform_3, window_bounds = array<i64: 1, 16, 16, 17>}, {transform_indices = @transform_4, window_bounds = array<i64: 1, 16, 16, 17>}]} {
    %c0 = arith.constant 0 : index
    %c0_0 = arith.constant 0 : index
    %c0_1 = arith.constant 0 : index
    %c0_2 = arith.constant 0 : index
    %0 = vector.load %arg1[%c0, %c0_0, %c0_1, %c0_2] : memref<1x18x18x17xf32, #tpu.memory_space<vmem>>, vector<1x16x16x17xf32>
    %1 = vector.shape_cast %0 : vector<1x16x16x17xf32> to vector<16x16x17xf32>
    %cst = arith.constant 6.250000e-02 : f32
    %2 = vector.broadcast %cst : f32 to vector<16x16x17xf32>
    %3 = arith.mulf %2, %1 : vector<16x16x17xf32>
    %c0_3 = arith.constant 0 : index
    %c0_4 = arith.constant 0 : index
    %c1 = arith.constant 1 : index
    %c0_5 = arith.constant 0 : index
    %4 = vector.load %arg1[%c0_3, %c0_4, %c1, %c0_5] : memref<1x18x18x17xf32, #tpu.memory_space<vmem>>, vector<1x16x16x17xf32>
    %5 = vector.shape_cast %4 : vector<1x16x16x17xf32> to vector<16x16x17xf32>
    %cst_6 = arith.constant 1.875000e-01 : f32
    %6 = vector.broadcast %cst_6 : f32 to vector<16x16x17xf32>
    %7 = arith.mulf %6, %5 : vector<16x16x17xf32>
    %8 = arith.addf %3, %7 : vector<16x16x17xf32>
    %c0_7 = arith.constant 0 : index
    %c1_8 = arith.constant 1 : index
    %c0_9 = arith.constant 0 : index
    %c0_10 = arith.constant 0 : index
    %9 = vector.load %arg1[%c0_7, %c1_8, %c0_9, %c0_10] : memref<1x18x18x17xf32, #tpu.memory_space<vmem>>, vector<1x16x16x17xf32>
    %10 = vector.shape_cast %9 : vector<1x16x16x17xf32> to vector<16x16x17xf32>
    %cst_11 = arith.constant 1.875000e-01 : f32
    %11 = vector.broadcast %cst_11 : f32 to vector<16x16x17xf32>
    %12 = arith.mulf %11, %10 : vector<16x16x17xf32>
    %13 = arith.addf %8, %12 : vector<16x16x17xf32>
    %c0_12 = arith.constant 0 : index
    %c1_13 = arith.constant 1 : index
    %c1_14 = arith.constant 1 : index
    %c0_15 = arith.constant 0 : index
    %14 = vector.load %arg1[%c0_12, %c1_13, %c1_14, %c0_15] : memref<1x18x18x17xf32, #tpu.memory_space<vmem>>, vector<1x16x16x17xf32>
    %15 = vector.shape_cast %14 : vector<1x16x16x17xf32> to vector<16x16x17xf32>
    %cst_16 = arith.constant 5.625000e-01 : f32
    %16 = vector.broadcast %cst_16 : f32 to vector<16x16x17xf32>
    %17 = arith.mulf %16, %15 : vector<16x16x17xf32>
    %18 = arith.addf %13, %17 : vector<16x16x17xf32>
    %c0_17 = arith.constant 0 : index
    %c0_18 = arith.constant 0 : index
    %c0_19 = arith.constant 0 : index
    %c0_20 = arith.constant 0 : index
    %19 = vector.load %arg2[%c0_17, %c0_18, %c0_19, %c0_20] : memref<1x16x16x17xf32, #tpu.memory_space<vmem>>, vector<1x16x16x17xf32>
    %20 = vector.shape_cast %19 : vector<1x16x16x17xf32> to vector<16x16x17xf32>
    %21 = vector.shape_cast %18 : vector<16x16x17xf32> to vector<1x16x16x17xf32>
    tpu.vector_store %arg2[%c0_17, %c0_18, %c0_19, %c0_20], %21 {strides = array<i32>} : memref<1x16x16x17xf32, #tpu.memory_space<vmem>>, vector<1x16x16x17xf32>,
    %c0_21 = arith.constant 0 : index
    %c0_22 = arith.constant 0 : index
    %c1_23 = arith.constant 1 : index
    %c0_24 = arith.constant 0 : index
    %22 = vector.load %arg1[%c0_21, %c0_22, %c1_23, %c0_24] : memref<1x18x18x17xf32, #tpu.memory_space<vmem>>, vector<1x16x16x17xf32>
    %23 = vector.shape_cast %22 : vector<1x16x16x17xf32> to vector<16x16x17xf32>
    %cst_25 = arith.constant 1.875000e-01 : f32
    %24 = vector.broadcast %cst_25 : f32 to vector<16x16x17xf32>
    %25 = arith.mulf %24, %23 : vector<16x16x17xf32>
    %c0_26 = arith.constant 0 : index
    %c0_27 = arith.constant 0 : index
    %c2 = arith.constant 2 : index
    %c0_28 = arith.constant 0 : index
    %26 = vector.load %arg1[%c0_26, %c0_27, %c2, %c0_28] : memref<1x18x18x17xf32, #tpu.memory_space<vmem>>, vector<1x16x16x17xf32>
    %27 = vector.shape_cast %26 : vector<1x16x16x17xf32> to vector<16x16x17xf32>
    %cst_29 = arith.constant 6.250000e-02 : f32
    %28 = vector.broadcast %cst_29 : f32 to vector<16x16x17xf32>
    %29 = arith.mulf %28, %27 : vector<16x16x17xf32>
    %30 = arith.addf %25, %29 : vector<16x16x17xf32>
    %c0_30 = arith.constant 0 : index
    %c1_31 = arith.constant 1 : index
    %c1_32 = arith.constant 1 : index
    %c0_33 = arith.constant 0 : index
    %31 = vector.load %arg1[%c0_30, %c1_31, %c1_32, %c0_33] : memref<1x18x18x17xf32, #tpu.memory_space<vmem>>, vector<1x16x16x17xf32>
    %32 = vector.shape_cast %31 : vector<1x16x16x17xf32> to vector<16x16x17xf32>
    %cst_34 = arith.constant 5.625000e-01 : f32
    %33 = vector.broadcast %cst_34 : f32 to vector<16x16x17xf32>
    %34 = arith.mulf %33, %32 : vector<16x16x17xf32>
    %35 = arith.addf %30, %34 : vector<16x16x17xf32>
    %c0_35 = arith.constant 0 : index
    %c1_36 = arith.constant 1 : index
    %c2_37 = arith.constant 2 : index
    %c0_38 = arith.constant 0 : index
    %36 = vector.load %arg1[%c0_35, %c1_36, %c2_37, %c0_38] : memref<1x18x18x17xf32, #tpu.memory_space<vmem>>, vector<1x16x16x17xf32>
    %37 = vector.shape_cast %36 : vector<1x16x16x17xf32> to vector<16x16x17xf32>
    %cst_39 = arith.constant 1.875000e-01 : f32
    %38 = vector.broadcast %cst_39 : f32 to vector<16x16x17xf32>
    %39 = arith.mulf %38, %37 : vector<16x16x17xf32>
    %40 = arith.addf %35, %39 : vector<16x16x17xf32>
    %c0_40 = arith.constant 0 : index
    %c0_41 = arith.constant 0 : index
    %c0_42 = arith.constant 0 : index
    %c0_43 = arith.constant 0 : index
    %41 = vector.load %arg3[%c0_40, %c0_41, %c0_42, %c0_43] : memref<1x16x16x17xf32, #tpu.memory_space<vmem>>, vector<1x16x16x17xf32>
    %42 = vector.shape_cast %41 : vector<1x16x16x17xf32> to vector<16x16x17xf32>
    %43 = vector.shape_cast %40 : vector<16x16x17xf32> to vector<1x16x16x17xf32>
    tpu.vector_store %arg3[%c0_40, %c0_41, %c0_42, %c0_43], %43 {strides = array<i32>} : memref<1x16x16x17xf32, #tpu.memory_space<vmem>>, vector<1x16x16x17xf32>,
    %c0_44 = arith.constant 0 : index
    %c1_45 = arith.constant 1 : index
    %c0_46 = arith.constant 0 : index
    %c0_47 = arith.constant 0 : index
    %44 = vector.load %arg1[%c0_44, %c1_45, %c0_46, %c0_47] : memref<1x18x18x17xf32, #tpu.memory_space<vmem>>, vector<1x16x16x17xf32>
    %45 = vector.shape_cast %44 : vector<1x16x16x17xf32> to vector<16x16x17xf32>
    %cst_48 = arith.constant 1.875000e-01 : f32
    %46 = vector.broadcast %cst_48 : f32 to vector<16x16x17xf32>
    %47 = arith.mulf %46, %45 : vector<16x16x17xf32>
    %c0_49 = arith.constant 0 : index
    %c1_50 = arith.constant 1 : index
    %c1_51 = arith.constant 1 : index
    %c0_52 = arith.constant 0 : index
    %48 = vector.load %arg1[%c0_49, %c1_50, %c1_51, %c0_52] : memref<1x18x18x17xf32, #tpu.memory_space<vmem>>, vector<1x16x16x17xf32>
    %49 = vector.shape_cast %48 : vector<1x16x16x17xf32> to vector<16x16x17xf32>
    %cst_53 = arith.constant 5.625000e-01 : f32
    %50 = vector.broadcast %cst_53 : f32 to vector<16x16x17xf32>
    %51 = arith.mulf %50, %49 : vector<16x16x17xf32>
    %52 = arith.addf %47, %51 : vector<16x16x17xf32>
    %c0_54 = arith.constant 0 : index
    %c2_55 = arith.constant 2 : index
    %c0_56 = arith.constant 0 : index
    %c0_57 = arith.constant 0 : index
    %53 = vector.load %arg1[%c0_54, %c2_55, %c0_56, %c0_57] : memref<1x18x18x17xf32, #tpu.memory_space<vmem>>, vector<1x16x16x17xf32>
    %54 = vector.shape_cast %53 : vector<1x16x16x17xf32> to vector<16x16x17xf32>
    %cst_58 = arith.constant 6.250000e-02 : f32
    %55 = vector.broadcast %cst_58 : f32 to vector<16x16x17xf32>
    %56 = arith.mulf %55, %54 : vector<16x16x17xf32>
    %57 = arith.addf %52, %56 : vector<16x16x17xf32>
    %c0_59 = arith.constant 0 : index
    %c2_60 = arith.constant 2 : index
    %c1_61 = arith.constant 1 : index
    %c0_62 = arith.constant 0 : index
    %58 = vector.load %arg1[%c0_59, %c2_60, %c1_61, %c0_62] : memref<1x18x18x17xf32, #tpu.memory_space<vmem>>, vector<1x16x16x17xf32>
    %59 = vector.shape_cast %58 : vector<1x16x16x17xf32> to vector<16x16x17xf32>
    %cst_63 = arith.constant 1.875000e-01 : f32
    %60 = vector.broadcast %cst_63 : f32 to vector<16x16x17xf32>
    %61 = arith.mulf %60, %59 : vector<16x16x17xf32>
    %62 = arith.addf %57, %61 : vector<16x16x17xf32>
    %c0_64 = arith.constant 0 : index
    %c0_65 = arith.constant 0 : index
    %c0_66 = arith.constant 0 : index
    %c0_67 = arith.constant 0 : index
    %63 = vector.load %arg4[%c0_64, %c0_65, %c0_66, %c0_67] : memref<1x16x16x17xf32, #tpu.memory_space<vmem>>, vector<1x16x16x17xf32>
    %64 = vector.shape_cast %63 : vector<1x16x16x17xf32> to vector<16x16x17xf32>
    %65 = vector.shape_cast %62 : vector<16x16x17xf32> to vector<1x16x16x17xf32>
    tpu.vector_store %arg4[%c0_64, %c0_65, %c0_66, %c0_67], %65 {strides = array<i32>} : memref<1x16x16x17xf32, #tpu.memory_space<vmem>>, vector<1x16x16x17xf32>,
    %c0_68 = arith.constant 0 : index
    %c1_69 = arith.constant 1 : index
    %c1_70 = arith.constant 1 : index
    %c0_71 = arith.constant 0 : index
    %66 = vector.load %arg1[%c0_68, %c1_69, %c1_70, %c0_71] : memref<1x18x18x17xf32, #tpu.memory_space<vmem>>, vector<1x16x16x17xf32>
    %67 = vector.shape_cast %66 : vector<1x16x16x17xf32> to vector<16x16x17xf32>
    %cst_72 = arith.constant 5.625000e-01 : f32
    %68 = vector.broadcast %cst_72 : f32 to vector<16x16x17xf32>
    %69 = arith.mulf %68, %67 : vector<16x16x17xf32>
    %c0_73 = arith.constant 0 : index
    %c1_74 = arith.constant 1 : index
    %c2_75 = arith.constant 2 : index
    %c0_76 = arith.constant 0 : index
    %70 = vector.load %arg1[%c0_73, %c1_74, %c2_75, %c0_76] : memref<1x18x18x17xf32, #tpu.memory_space<vmem>>, vector<1x16x16x17xf32>
    %71 = vector.shape_cast %70 : vector<1x16x16x17xf32> to vector<16x16x17xf32>
    %cst_77 = arith.constant 1.875000e-01 : f32
    %72 = vector.broadcast %cst_77 : f32 to vector<16x16x17xf32>
    %73 = arith.mulf %72, %71 : vector<16x16x17xf32>
    %74 = arith.addf %69, %73 : vector<16x16x17xf32>
    %c0_78 = arith.constant 0 : index
    %c2_79 = arith.constant 2 : index
    %c1_80 = arith.constant 1 : index
    %c0_81 = arith.constant 0 : index
    %75 = vector.load %arg1[%c0_78, %c2_79, %c1_80, %c0_81] : memref<1x18x18x17xf32, #tpu.memory_space<vmem>>, vector<1x16x16x17xf32>
    %76 = vector.shape_cast %75 : vector<1x16x16x17xf32> to vector<16x16x17xf32>
    %cst_82 = arith.constant 1.875000e-01 : f32
    %77 = vector.broadcast %cst_82 : f32 to vector<16x16x17xf32>
    %78 = arith.mulf %77, %76 : vector<16x16x17xf32>
    %79 = arith.addf %74, %78 : vector<16x16x17xf32>
    %c0_83 = arith.constant 0 : index
    %c2_84 = arith.constant 2 : index
    %c2_85 = arith.constant 2 : index
    %c0_86 = arith.constant 0 : index
    %80 = vector.load %arg1[%c0_83, %c2_84, %c2_85, %c0_86] : memref<1x18x18x17xf32, #tpu.memory_space<vmem>>, vector<1x16x16x17xf32>
    %81 = vector.shape_cast %80 : vector<1x16x16x17xf32> to vector<16x16x17xf32>
    %cst_87 = arith.constant 6.250000e-02 : f32
    %82 = vector.broadcast %cst_87 : f32 to vector<16x16x17xf32>
    %83 = arith.mulf %82, %81 : vector<16x16x17xf32>
    %84 = arith.addf %79, %83 : vector<16x16x17xf32>
    %c0_88 = arith.constant 0 : index
    %c0_89 = arith.constant 0 : index
    %c0_90 = arith.constant 0 : index
    %c0_91 = arith.constant 0 : index
    %85 = vector.load %arg5[%c0_88, %c0_89, %c0_90, %c0_91] : memref<1x16x16x17xf32, #tpu.memory_space<vmem>>, vector<1x16x16x17xf32>
    %86 = vector.shape_cast %85 : vector<1x16x16x17xf32> to vector<16x16x17xf32>
    %87 = vector.shape_cast %84 : vector<16x16x17xf32> to vector<1x16x16x17xf32>
    tpu.vector_store %arg5[%c0_88, %c0_89, %c0_90, %c0_91], %87 {strides = array<i32>} : memref<1x16x16x17xf32, #tpu.memory_space<vmem>>, vector<1x16x16x17xf32>,
    return
  }
  func.func @transform_0(%arg0: i32) -> (i32, i32, i32, i32) {
    %c0_i32 = arith.constant 0 : i32
    %c0_i32_0 = arith.constant 0 : i32
    %c0_i32_1 = arith.constant 0 : i32
    %c0_i32_2 = arith.constant 0 : i32
    return %arg0, %c0_i32, %c0_i32_0, %c0_i32_1 : i32, i32, i32, i32
  }
  func.func @transform_1(%arg0: i32) -> (i32, i32, i32, i32) {
    %c0_i32 = arith.constant 0 : i32
    %c0_i32_0 = arith.constant 0 : i32
    %c0_i32_1 = arith.constant 0 : i32
    %c0_i32_2 = arith.constant 0 : i32
    return %arg0, %c0_i32, %c0_i32_0, %c0_i32_1 : i32, i32, i32, i32
  }
  func.func @transform_2(%arg0: i32) -> (i32, i32, i32, i32) {
    %c0_i32 = arith.constant 0 : i32
    %c0_i32_0 = arith.constant 0 : i32
    %c0_i32_1 = arith.constant 0 : i32
    %c0_i32_2 = arith.constant 0 : i32
    return %arg0, %c0_i32, %c0_i32_0, %c0_i32_1 : i32, i32, i32, i32
  }
  func.func @transform_3(%arg0: i32) -> (i32, i32, i32, i32) {
    %c0_i32 = arith.constant 0 : i32
    %c0_i32_0 = arith.constant 0 : i32
    %c0_i32_1 = arith.constant 0 : i32
    %c0_i32_2 = arith.constant 0 : i32
    return %arg0, %c0_i32, %c0_i32_0, %c0_i32_1 : i32, i32, i32, i32
  }
  func.func @transform_4(%arg0: i32) -> (i32, i32, i32, i32) {
    %c0_i32 = arith.constant 0 : i32
    %c0_i32_0 = arith.constant 0 : i32
    %c0_i32_1 = arith.constant 0 : i32
    %c0_i32_2 = arith.constant 0 : i32
    return %arg0, %c0_i32, %c0_i32_0, %c0_i32_1 : i32, i32, i32, i32
  }
}

</mosaic_0001>

<llo_original>
// kernel: tile.8
$region0: #{tile.8}
  #allocation2 [shape = 's32[1]{0}', space=sflag, size = 0x4, scoped, tag = 'scoped memory for tile.8']
  %s0 = inlined_call_operand.hbm [shape: f32[17], index: 0, kind: input, shape index: {}]
  %s1 = inlined_call_operand.vmem [shape: f32[4,17], index: 1, kind: output, shape index: {}]
  $region1: #{tile.8} parent=0
    #allocation0 [shape = 'u8[512]{0}', space=vmem, size = 0x400, scoped, tag = 'operand span for operand 0']
    #allocation1 [shape = 's32[1]{0}', space=sflag, size = 0x4, scoped, tag = 'scoped memory for tile.8']
    %2 = vsyncpa [#allocation1], 0
    // Predicated region
    $region2: #{tile.8} parent=1 // pred_check
      _
    $region3: #{tile.8} parent=1 // pred_check_branch
      %4 = sbr.rel (0) target = $region5
    $region4: #{tile.8} parent=1 // pred_region
      %s6 = ssub.s32 16, 16
      %7 = vsyncadd [#allocation1], %s6
      %s9 = sshll.u32 [#allocation0], 4
      %s10 = int_to_ptr.vmem [resolvable:$true] %s9
      %12 = dma.hbm_to_vmem [thread:$0]  %s0, 16, %s10, [#allocation1]
    $region5: #{tile.8} parent=1 // pred_fallthru
      _
    // Predicated region
    $region6: #{tile.8} parent=1 // pred_check
      _
    $region7: #{tile.8} parent=1 // pred_check_branch
      %14 = sbr.rel (0) target = $region9
    $region8: #{tile.8} parent=1 // pred_region
      %15 = dma.done [#allocation1], 16
    $region9: #{tile.8} parent=1 // pred_fallthru
      _
    %v16 = vld [vmem:[#allocation0] ss:$0 sm:$0xff]
    %17 = vst [vmem:[%s1] sm:$0xf] %v16
    %18 = vsyncpa [#allocation1], 1

// kernel: tile.9
$region0: #{tile.9}
  %s0 = inlined_call_operand.vmem [shape: f32[4,17], index: 0, kind: input, shape index: {}]
  %s1 = inlined_call_operand.vmem [shape: f32[68], index: 1, kind: output, shape index: {}]
  $region1: #{tile.9} parent=0
    #allocation0 [shape = 'u8[4096]{0}', space=vmem, size = 0x1000, scoped, tag = 'scoped mem for output reshape']
    #allocation1 [shape = 'u8[4096]{0}', space=vmem, size = 0x1000, scoped, tag = 'scoped mem for input reshape']
    %s3 = sshll.u32 1, 4
    %s4 = ssub.s32 %s3, 1
    %v5 = vld [vmem:[%s0] sm:%s4]
    %6 = vst [vmem:[#allocation1] sm:%s4] %v5
    %v7 = vld [vmem:[#allocation1] sm:$0x1]
    %vm8 = vcmask 138240
    %9 = vst.msk [vmem:[#allocation0] sm:$0x1] %vm8, %v7
    %s10 = scalar_lea.vmem [#allocation1], 3
    %v11 = vld [vmem:[%s10] sm:$0x1]
    %12 = vrot.lane.b32.xlu0 %v11, 51
    %v13 = vpop.permute.xlu0 %12
    %vm14 = vcmask 556440
    %15 = vst.msk [vmem:[#allocation0] sm:$0x1] %vm14, %v13
    %s16 = scalar_lea.vmem [#allocation1], 2
    %v17 = vld [vmem:[%s16] sm:$0x1]
    %18 = vrot.lane.b32.xlu0 %v17, 34
    %v19 = vpop.permute.xlu0 %18
    %vm20 = vcmask 417040
    %21 = vst.msk [vmem:[#allocation0] sm:$0x1] %vm20, %v19
    %s22 = scalar_lea.vmem [#allocation1], 1
    %v23 = vld [vmem:[%s22] sm:$0x1]
    %24 = vrot.lane.b32.xlu0 %v23, 17
    %v25 = vpop.permute.xlu0 %24
    %vm26 = vcmask 277640
    %27 = vst.msk [vmem:[#allocation0] sm:$0x1] %vm26, %v25
    %s29 = sshll.u32 1, 1
    %s30 = ssub.s32 %s29, 1
    %v32 = vld [vmem:[#allocation0] sm:%s30]
    %s33 = sshll.u32 1, 1
    %s34 = ssub.s32 %s33, 1
    %35 = vst [vmem:[%s1] sm:%s34] %v32

// kernel: keypoint_outputs_forward.2
$region0: #{keypoint_outputs_forward.2}
  #allocation0 [shape = 'u32[]', space=smem, size = 0x4, offset = 0x4, fixed_abs, tag = 'smem constant byte address 0x4 - core index']
  #allocation1 [shape = 'u32[144,128]{1,0:T(1,128)}', space=vmem, size = 0x12000, scoped, tag = 'internal scratch']
  %s0 = inlined_call_operand.vmem [shape: bf16[256,128], index: 0, kind: input, shape index: {}]
  %s1 = inlined_call_operand.vmem [shape: bf16[128,128], index: 1, kind: input, shape index: {}]
  %s2 = inlined_call_operand.vmem [shape: f32[1,128], index: 2, kind: input, shape index: {}]
  %s3 = inlined_call_operand.vmem [shape: f32[256,128], index: 3, kind: output, shape index: {}]
  %s4 = sld [smem:[#allocation0]]
  $region22: #{keypoint_outputs_forward.2} parent=0
    _
  %s6 = ssub.s32 1, %s4
  %s7 = scalar_select 0, %s6, %s4
  // Predicated region
  $region2: #{keypoint_outputs_forward.2} parent=0 // pred_check
    _
  $region3: #{keypoint_outputs_forward.2} parent=0 // pred_check_branch
    %9 = sbr.rel (0) target = $region5
  $region4: #{keypoint_outputs_forward.2} parent=0 // pred_region
    _
  $region5: #{keypoint_outputs_forward.2} parent=0 // pred_fallthru
    _
  // Predicated region
  $region6: #{keypoint_outputs_forward.2} parent=0 // pred_check
    _
  $region7: #{keypoint_outputs_forward.2} parent=0 // pred_check_branch
    %11 = sbr.rel (0) target = $region9
  $region8: #{keypoint_outputs_forward.2} parent=0 // pred_region
    _
  $region9: #{keypoint_outputs_forward.2} parent=0 // pred_fallthru
    _
  // Predicated region
  $region10: #{keypoint_outputs_forward.2} parent=0 // pred_check
    _
  $region11: #{keypoint_outputs_forward.2} parent=0 // pred_check_branch
    %13 = sbr.rel (0) target = $region13
  $region12: #{keypoint_outputs_forward.2} parent=0 // pred_region
    _
  $region13: #{keypoint_outputs_forward.2} parent=0 // pred_fallthru
    _
  %v15 = vld [vmem:[%s0] sm:$0xf]
  %v16 = vld [vmem:[%s0 + $0x4] sm:$0xf]
  %v17 = vld [vmem:[%s0 + $0x8] sm:$0xf]
  %v18 = vld [vmem:[%s0 + $0xc] sm:$0xf]
  %v19 = vld [vmem:[%s0 + $0x10] sm:$0xf]
  %v20 = vld [vmem:[%s0 + $0x14] sm:$0xf]
  %v21 = vld [vmem:[%s0 + $0x18] sm:$0xf]
  %v22 = vld [vmem:[%s0 + $0x1c] sm:$0xf]
  %v23 = vld [vmem:[%s0 + $0x20] sm:$0xf]
  %v24 = vld [vmem:[%s0 + $0x24] sm:$0xf]
  %v25 = vld [vmem:[%s0 + $0x28] sm:$0xf]
  %v26 = vld [vmem:[%s0 + $0x2c] sm:$0xf]
  %v27 = vld [vmem:[%s0 + $0x30] sm:$0xf]
  %v28 = vld [vmem:[%s0 + $0x34] sm:$0xf]
  %v29 = vld [vmem:[%s0 + $0x38] sm:$0xf]
  %v30 = vld [vmem:[%s0 + $0x3c] sm:$0xf]
  %v31 = vld [vmem:[%s0 + $0x40] sm:$0xf]
  %v32 = vld [vmem:[%s0 + $0x44] sm:$0xf]
  %v33 = vld [vmem:[%s0 + $0x48] sm:$0xf]
  %v34 = vld [vmem:[%s0 + $0x4c] sm:$0xf]
  %v35 = vld [vmem:[%s0 + $0x50] sm:$0xf]
  %v36 = vld [vmem:[%s0 + $0x54] sm:$0xf]
  %v37 = vld [vmem:[%s0 + $0x58] sm:$0xf]
  %v38 = vld [vmem:[%s0 + $0x5c] sm:$0xf]
  %v39 = vld [vmem:[%s0 + $0x60] sm:$0xf]
  %v40 = vld [vmem:[%s0 + $0x64] sm:$0xf]
  %v41 = vld [vmem:[%s0 + $0x68] sm:$0xf]
  %v42 = vld [vmem:[%s0 + $0x6c] sm:$0xf]
  %v43 = vld [vmem:[%s0 + $0x70] sm:$0xf]
  %v44 = vld [vmem:[%s0 + $0x74] sm:$0xf]
  %v45 = vld [vmem:[%s0 + $0x78] sm:$0xf]
  %v46 = vld [vmem:[%s0 + $0x7c] sm:$0xf]
  %v47 = vld [vmem:[%s1] sm:$0xf]
  %v48 = vld [vmem:[%s1 + $0x4] sm:$0xf]
  %v49 = vld [vmem:[%s1 + $0x8] sm:$0xf]
  %v50 = vld [vmem:[%s1 + $0xc] sm:$0xf]
  %v51 = vld [vmem:[%s1 + $0x10] sm:$0xf]
  %v52 = vld [vmem:[%s1 + $0x14] sm:$0xf]
  %v53 = vld [vmem:[%s1 + $0x18] sm:$0xf]
  %v54 = vld [vmem:[%s1 + $0x1c] sm:$0xf]
  %v55 = vld [vmem:[%s1 + $0x20] sm:$0xf]
  %v56 = vld [vmem:[%s1 + $0x24] sm:$0xf]
  %v57 = vld [vmem:[%s1 + $0x28] sm:$0xf]
  %v58 = vld [vmem:[%s1 + $0x2c] sm:$0xf]
  %v59 = vld [vmem:[%s1 + $0x30] sm:$0xf]
  %v60 = vld [vmem:[%s1 + $0x34] sm:$0xf]
  %v61 = vld [vmem:[%s1 + $0x38] sm:$0xf]
  %v62 = vld [vmem:[%s1 + $0x3c] sm:$0xf]
  %v63 = vld [vmem:[%s2] sm:$0x1]
  %v65 = vlaneseq
  %v66 = vshrl.u32 %v65, 7
  %v67 = vsub.s32 0, %v66
  %v68 = vrot.slane %v63, %v67
  %v102 = vunpack.c.l.b16 %v15
  %v103 = vunpack.c.l.b16 %v16
  %v104 = vunpack.c.l.b16 %v17
  %v105 = vunpack.c.l.b16 %v18
  %v106 = vunpack.c.l.b16 %v19
  %v107 = vunpack.c.l.b16 %v20
  %v108 = vunpack.c.l.b16 %v21
  %v109 = vunpack.c.l.b16 %v22
  %v110 = vunpack.c.l.b16 %v23
  %v111 = vunpack.c.l.b16 %v24
  %v112 = vunpack.c.l.b16 %v25
  %v113 = vunpack.c.l.b16 %v26
  %v114 = vunpack.c.l.b16 %v27
  %v115 = vunpack.c.l.b16 %v28
  %v116 = vunpack.c.l.b16 %v29
  %v117 = vunpack.c.l.b16 %v30
  %v118 = vunpack.c.l.b16 %v31
  %v119 = vunpack.c.l.b16 %v32
  %v120 = vunpack.c.l.b16 %v33
  %v121 = vunpack.c.l.b16 %v34
  %v122 = vunpack.c.l.b16 %v35
  %v123 = vunpack.c.l.b16 %v36
  %v124 = vunpack.c.l.b16 %v37
  %v125 = vunpack.c.l.b16 %v38
  %v126 = vunpack.c.l.b16 %v39
  %v127 = vunpack.c.l.b16 %v40
  %v128 = vunpack.c.l.b16 %v41
  %v129 = vunpack.c.l.b16 %v42
  %v130 = vunpack.c.l.b16 %v43
  %v131 = vunpack.c.l.b16 %v44
  %v132 = vunpack.c.l.b16 %v45
  %v133 = vunpack.c.l.b16 %v46
  %v134 = vpack.c.b16 %v103, %v102
  %v135 = vpack.c.b16 %v105, %v104
  %v136 = vpack.c.b16 %v107, %v106
  %v137 = vpack.c.b16 %v109, %v108
  %v138 = vpack.c.b16 %v111, %v110
  %v139 = vpack.c.b16 %v113, %v112
  %v140 = vpack.c.b16 %v115, %v114
  %v141 = vpack.c.b16 %v117, %v116
  %v142 = vpack.c.b16 %v119, %v118
  %v143 = vpack.c.b16 %v121, %v120
  %v144 = vpack.c.b16 %v123, %v122
  %v145 = vpack.c.b16 %v125, %v124
  %v146 = vpack.c.b16 %v127, %v126
  %v147 = vpack.c.b16 %v129, %v128
  %v148 = vpack.c.b16 %v131, %v130
  %v149 = vpack.c.b16 %v133, %v132
  %v182 = vunpack.c.l.b16 %v47
  %v183 = vunpack.c.l.b16 %v48
  %v184 = vunpack.c.l.b16 %v49
  %v185 = vunpack.c.l.b16 %v50
  %v186 = vunpack.c.l.b16 %v51
  %v187 = vunpack.c.l.b16 %v52
  %v188 = vunpack.c.l.b16 %v53
  %v189 = vunpack.c.l.b16 %v54
  %v190 = vunpack.c.l.b16 %v55
  %v191 = vunpack.c.l.b16 %v56
  %v192 = vunpack.c.l.b16 %v57
  %v193 = vunpack.c.l.b16 %v58
  %v194 = vunpack.c.l.b16 %v59
  %v195 = vunpack.c.l.b16 %v60
  %v196 = vunpack.c.l.b16 %v61
  %v197 = vunpack.c.l.b16 %v62
  %v198 = vpack.c.b16 %v183, %v182
  %v199 = vpack.c.b16 %v185, %v184
  %v200 = vpack.c.b16 %v187, %v186
  %v201 = vpack.c.b16 %v189, %v188
  %v202 = vpack.c.b16 %v191, %v190
  %v203 = vpack.c.b16 %v193, %v192
  %v204 = vpack.c.b16 %v195, %v194
  %v205 = vpack.c.b16 %v197, %v196
  %214 = vmatprep.subr.bf16.mxu0 0
  %215 = vmatpush1.bf16.msra.mxu0 %v205
  %216 = vmatprep.subr.bf16.mxu0 0
  %217 = vmatpush1.bf16.msra.mxu0 %v204
  %218 = vmatprep.subr.bf16.mxu0 0
  %219 = vmatpush1.bf16.msra.mxu0 %v203
  %220 = vmatprep.subr.bf16.mxu0 0
  %221 = vmatpush1.bf16.msra.mxu0 %v202
  %222 = vmatprep.subr.bf16.mxu0 0
  %223 = vmatpush1.bf16.msra.mxu0 %v201
  %224 = vmatprep.subr.bf16.mxu0 0
  %225 = vmatpush1.bf16.msra.mxu0 %v200
  %226 = vmatprep.subr.bf16.mxu0 0
  %227 = vmatpush1.bf16.msra.mxu0 %v199
  %228 = vmatprep.subr.bf16.mxu0 0
  %229 = vmatpush1.bf16.msra.mxu0 %v198
  %230 = vmatprep.subr.bf16.mxu0 0
  %231 = vmatpush2.bf16.msra.mxu0 0
  %232 = vmatprep.subr.bf16.mxu0 0
  %233 = vmatpush2.bf16.msra.mxu0 0
  %234 = vmatprep.subr.bf16.mxu0 0
  %235 = vmatpush2.bf16.msra.mxu0 0
  %236 = vmatprep.subr.bf16.mxu0 0
  %237 = vmatpush2.bf16.msra.mxu0 0
  %238 = vmatprep.subr.bf16.mxu0 0
  %239 = vmatpush2.bf16.msra.mxu0 0
  %240 = vmatprep.subr.bf16.mxu0 0
  %241 = vmatpush2.bf16.msra.mxu0 0
  %242 = vmatprep.subr.bf16.mxu0 0
  %243 = vmatpush2.bf16.msra.mxu0 0
  %244 = vmatprep.subr.bf16.mxu0 0
  %245 = vmatpush2.bf16.msra.mxu0 0
  %246 = vmatprep.mubr.bf16.mxu0 0
  %247 = vmatmul.mubr.bf16.gmra.mxu0 %v134
  %v248 = vpop.f32.mrf.mxu0
  %v249 = vadd.f32 %v68, %v248
  %v250 = vpop.f32.mrf.mxu0
  %v251 = vpop.f32.mrf.mxu0
  %v252 = vadd.f32 %v68, %v251
  %v253 = vpop.f32.mrf.mxu0
  %254 = vmatprep.mubr.bf16.mxu0 0
  %255 = vmatmul.mubr.bf16.gmra.mxu0 %v135
  %v256 = vpop.f32.mrf.mxu0
  %v257 = vadd.f32 %v68, %v256
  %v258 = vpop.f32.mrf.mxu0
  %v259 = vpop.f32.mrf.mxu0
  %v260 = vadd.f32 %v68, %v259
  %v261 = vpop.f32.mrf.mxu0
  %262 = vmatprep.mubr.bf16.mxu0 0
  %263 = vmatmul.mubr.bf16.gmra.mxu0 %v136
  %v264 = vpop.f32.mrf.mxu0
  %v265 = vadd.f32 %v68, %v264
  %v266 = vpop.f32.mrf.mxu0
  %v267 = vpop.f32.mrf.mxu0
  %v268 = vadd.f32 %v68, %v267
  %v269 = vpop.f32.mrf.mxu0
  %270 = vmatprep.mubr.bf16.mxu0 0
  %271 = vmatmul.mubr.bf16.gmra.mxu0 %v137
  %v272 = vpop.f32.mrf.mxu0
  %v273 = vadd.f32 %v68, %v272
  %v274 = vpop.f32.mrf.mxu0
  %v275 = vpop.f32.mrf.mxu0
  %v276 = vadd.f32 %v68, %v275
  %v277 = vpop.f32.mrf.mxu0
  %278 = vmatprep.mubr.bf16.mxu0 0
  %279 = vmatmul.mubr.bf16.gmra.mxu0 %v138
  %v280 = vpop.f32.mrf.mxu0
  %v281 = vadd.f32 %v68, %v280
  %v282 = vpop.f32.mrf.mxu0
  %v283 = vpop.f32.mrf.mxu0
  %v284 = vadd.f32 %v68, %v283
  %v285 = vpop.f32.mrf.mxu0
  %286 = vmatprep.mubr.bf16.mxu0 0
  %287 = vmatmul.mubr.bf16.gmra.mxu0 %v139
  %v288 = vpop.f32.mrf.mxu0
  %v289 = vadd.f32 %v68, %v288
  %v290 = vpop.f32.mrf.mxu0
  %v291 = vpop.f32.mrf.mxu0
  %v292 = vadd.f32 %v68, %v291
  %v293 = vpop.f32.mrf.mxu0
  %294 = vmatprep.mubr.bf16.mxu0 0
  %295 = vmatmul.mubr.bf16.gmra.mxu0 %v140
  %v296 = vpop.f32.mrf.mxu0
  %v297 = vadd.f32 %v68, %v296
  %v298 = vpop.f32.mrf.mxu0
  %v299 = vpop.f32.mrf.mxu0
  %v300 = vadd.f32 %v68, %v299
  %v301 = vpop.f32.mrf.mxu0
  %302 = vmatprep.mubr.bf16.mxu0 0
  %303 = vmatmul.mubr.bf16.gmra.mxu0 %v141
  %v304 = vpop.f32.mrf.mxu0
  %v305 = vadd.f32 %v68, %v304
  %v306 = vpop.f32.mrf.mxu0
  %v307 = vpop.f32.mrf.mxu0
  %v308 = vadd.f32 %v68, %v307
  %v309 = vpop.f32.mrf.mxu0
  %310 = vmatprep.mubr.bf16.mxu0 0
  %311 = vmatmul.mubr.bf16.gmra.mxu0 %v142
  %v312 = vpop.f32.mrf.mxu0
  %v313 = vadd.f32 %v68, %v312
  %v314 = vpop.f32.mrf.mxu0
  %v315 = vpop.f32.mrf.mxu0
  %v316 = vadd.f32 %v68, %v315
  %v317 = vpop.f32.mrf.mxu0
  %318 = vmatprep.mubr.bf16.mxu0 0
  %319 = vmatmul.mubr.bf16.gmra.mxu0 %v143
  %v320 = vpop.f32.mrf.mxu0
  %v321 = vadd.f32 %v68, %v320
  %v322 = vpop.f32.mrf.mxu0
  %v323 = vpop.f32.mrf.mxu0
  %v324 = vadd.f32 %v68, %v323
  %v325 = vpop.f32.mrf.mxu0
  %326 = vmatprep.mubr.bf16.mxu0 0
  %327 = vmatmul.mubr.bf16.gmra.mxu0 %v144
  %v328 = vpop.f32.mrf.mxu0
  %v329 = vadd.f32 %v68, %v328
  %v330 = vpop.f32.mrf.mxu0
  %v331 = vpop.f32.mrf.mxu0
  %v332 = vadd.f32 %v68, %v331
  %v333 = vpop.f32.mrf.mxu0
  %334 = vmatprep.mubr.bf16.mxu0 0
  %335 = vmatmul.mubr.bf16.gmra.mxu0 %v145
  %v336 = vpop.f32.mrf.mxu0
  %v337 = vadd.f32 %v68, %v336
  %v338 = vpop.f32.mrf.mxu0
  %v339 = vpop.f32.mrf.mxu0
  %v340 = vadd.f32 %v68, %v339
  %v341 = vpop.f32.mrf.mxu0
  %342 = vmatprep.mubr.bf16.mxu0 0
  %343 = vmatmul.mubr.bf16.gmra.mxu0 %v146
  %v344 = vpop.f32.mrf.mxu0
  %v345 = vadd.f32 %v68, %v344
  %v346 = vpop.f32.mrf.mxu0
  %v347 = vpop.f32.mrf.mxu0
  %v348 = vadd.f32 %v68, %v347
  %v349 = vpop.f32.mrf.mxu0
  %350 = vmatprep.mubr.bf16.mxu0 0
  %351 = vmatmul.mubr.bf16.gmra.mxu0 %v147
  %v352 = vpop.f32.mrf.mxu0
  %v353 = vadd.f32 %v68, %v352
  %v354 = vpop.f32.mrf.mxu0
  %v355 = vpop.f32.mrf.mxu0
  %v356 = vadd.f32 %v68, %v355
  %v357 = vpop.f32.mrf.mxu0
  %358 = vmatprep.mubr.bf16.mxu0 0
  %359 = vmatmul.mubr.bf16.gmra.mxu0 %v148
  %v360 = vpop.f32.mrf.mxu0
  %v361 = vadd.f32 %v68, %v360
  %v362 = vpop.f32.mrf.mxu0
  %v363 = vpop.f32.mrf.mxu0
  %v364 = vadd.f32 %v68, %v363
  %v365 = vpop.f32.mrf.mxu0
  %366 = vmatprep.mubr.bf16.mxu0 0
  %367 = vmatmul.mubr.bf16.gmra.mxu0 %v149
  %v368 = vpop.f32.mrf.mxu0
  %v369 = vadd.f32 %v68, %v368
  %v370 = vpop.f32.mrf.mxu0
  %v371 = vpop.f32.mrf.mxu0
  %v372 = vadd.f32 %v68, %v371
  %v373 = vpop.f32.mrf.mxu0
  %374 = vdwg.mxu0
  %375 = vst [vmem:[%s3] sm:$0xff] %v249
  %376 = vst [vmem:[%s3 + $0x8] sm:$0xff] %v252
  %377 = vst [vmem:[%s3 + $0x10] sm:$0xff] %v257
  %378 = vst [vmem:[%s3 + $0x18] sm:$0xff] %v260
  %379 = vst [vmem:[%s3 + $0x20] sm:$0xff] %v265
  %380 = vst [vmem:[%s3 + $0x28] sm:$0xff] %v268
  %381 = vst [vmem:[%s3 + $0x30] sm:$0xff] %v273
  %382 = vst [vmem:[%s3 + $0x38] sm:$0xff] %v276
  %383 = vst [vmem:[%s3 + $0x40] sm:$0xff] %v281
  %384 = vst [vmem:[%s3 + $0x48] sm:$0xff] %v284
  %385 = vst [vmem:[%s3 + $0x50] sm:$0xff] %v289
  %386 = vst [vmem:[%s3 + $0x58] sm:$0xff] %v292
  %387 = vst [vmem:[%s3 + $0x60] sm:$0xff] %v297
  %388 = vst [vmem:[%s3 + $0x68] sm:$0xff] %v300
  %389 = vst [vmem:[%s3 + $0x70] sm:$0xff] %v305
  %390 = vst [vmem:[%s3 + $0x78] sm:$0xff] %v308
  %391 = vst [vmem:[%s3 + $0x80] sm:$0xff] %v313
  %392 = vst [vmem:[%s3 + $0x88] sm:$0xff] %v316
  %393 = vst [vmem:[%s3 + $0x90] sm:$0xff] %v321
  %394 = vst [vmem:[%s3 + $0x98] sm:$0xff] %v324
  %395 = vst [vmem:[%s3 + $0xa0] sm:$0xff] %v329
  %396 = vst [vmem:[%s3 + $0xa8] sm:$0xff] %v332
  %397 = vst [vmem:[%s3 + $0xb0] sm:$0xff] %v337
  %398 = vst [vmem:[%s3 + $0xb8] sm:$0xff] %v340
  %399 = vst [vmem:[%s3 + $0xc0] sm:$0xff] %v345
  %400 = vst [vmem:[%s3 + $0xc8] sm:$0xff] %v348
  %401 = vst [vmem:[%s3 + $0xd0] sm:$0xff] %v353
  %402 = vst [vmem:[%s3 + $0xd8] sm:$0xff] %v356
  %403 = vst [vmem:[%s3 + $0xe0] sm:$0xff] %v361
  %404 = vst [vmem:[%s3 + $0xe8] sm:$0xff] %v364
  %405 = vst [vmem:[%s3 + $0xf0] sm:$0xff] %v369
  %406 = vst [vmem:[%s3 + $0xf8] sm:$0xff] %v372
  // Predicated region
  $region14: #{keypoint_outputs_forward.2} parent=0 // pred_check
    _
  $region15: #{keypoint_outputs_forward.2} parent=0 // pred_check_branch
    %408 = sbr.rel (0) target = $region17
  $region16: #{keypoint_outputs_forward.2} parent=0 // pred_region
    _
  $region17: #{keypoint_outputs_forward.2} parent=0 // pred_fallthru
    _
  // Predicated region
  $region18: #{keypoint_outputs_forward.2} parent=0 // pred_check
    _
  $region19: #{keypoint_outputs_forward.2} parent=0 // pred_check_branch
    %410 = sbr.rel (0) target = $region21
  $region20: #{keypoint_outputs_forward.2} parent=0 // pred_region
    _
  $region21: #{keypoint_outputs_forward.2} parent=0 // pred_fallthru
    _

// kernel: keypoint_outputs_forward.3
$region0: #{keypoint_outputs_forward.3}
  #allocation0 [shape = 'u32[]', space=smem, size = 0x4, offset = 0x4, fixed_abs, tag = 'smem constant byte address 0x4 - core index']
  #allocation1 [shape = 'u32[144,128]{1,0:T(1,128)}', space=vmem, size = 0x12000, scoped, tag = 'internal scratch']
  %s0 = inlined_call_operand.vmem [shape: f32[2,18,18,17], index: 0, kind: input, shape index: {}]
  %s1 = inlined_call_operand.vmem [shape: f32[2,16,16,17], index: 1, kind: output, shape index: {0}]
  %s2 = inlined_call_operand.vmem [shape: f32[2,16,16,17], index: 2, kind: output, shape index: {1}]
  %s3 = inlined_call_operand.vmem [shape: f32[2,16,16,17], index: 3, kind: output, shape index: {2}]
  %s4 = inlined_call_operand.vmem [shape: f32[2,16,16,17], index: 4, kind: output, shape index: {3}]
  %5 = xla_tuple %s1, %s2, %s3, %s4
  %s6 = sld [smem:[#allocation0]]
  $region61: #{keypoint_outputs_forward.3} parent=0
    _
  %s8 = ssub.s32 1, %s6
  %s9 = scalar_select 0, %s8, %s6
  loop: start=0, step=1, limit=4
  $region2: #{keypoint_outputs_forward.3} parent=0 // loop_pre_header
    _
  $region3: #{keypoint_outputs_forward.3} parent=0 // loop_header
    %s11 = sphi 0, %s15
    %p12 = scmp.ge.s32.totalorder %s11, 4
    %s21 = sphi 0, %s23
    %s24 = sphi 0, %s21
    %s25 = sphi 0, %s24
    %s41 = sphi 0, %s25
    %s47 = sphi 0, %s49
    %s50 = sphi 0, %s47
    %s51 = sphi 0, %s50
    %s67 = sphi 0, %s51
    %s73 = sphi 0, %s75
    %s76 = sphi 0, %s73
    %s77 = sphi 0, %s76
    %s93 = sphi 0, %s77
    %s99 = sphi 0, %s101
    %s102 = sphi 0, %s99
    %s103 = sphi 0, %s102
    %s119 = sphi 0, %s103
    %s125 = sphi 0, %s127
    %s128 = sphi 0, %s125
    %s129 = sphi 0, %s128
    %s145 = sphi 0, %s129
  $region4: #{keypoint_outputs_forward.3} parent=0 // loop_header_branch
    %14 = sbr.rel (%p12) target = $region8
  $region5: #{keypoint_outputs_forward.3} parent=0 // loop_body
    %s16 = ssub.s32 %s11, 1
    %s17 = ssub.s32 %s11, 2
    %s18 = sadd.s32 %s11, 1
    %s19 = ssub.s32 %s11, %s18
    %p20 = scmp.eq.s32.totalorder %s19, 0
    %s22 = sadd.s32 %s21, 1
    %s23 = scalar_select %p20, %s21, %s22
    %p26 = pneg %p20
    %p27 = scmp.eq.s32.totalorder %s11, 1
    %p28 = por %p26, %p27
    %p29 = scmp.ne.s32.totalorder %s21, %s24
    %p30 = scmp.eq.s32.totalorder %s11, 0
    %p31 = por %p29, %p30
    %p32 = scmp.ne.s32.totalorder %s21, %s24
    %p33 = scmp.eq.s32.totalorder %s16, 1
    %p34 = por %p32, %p33
    %p35 = scmp.ne.s32.totalorder %s24, %s25
    %p36 = scmp.eq.s32.totalorder %s16, 0
    %p37 = por %p35, %p36
    %p38 = scmp.ne.s32.totalorder %s24, %s25
    %p39 = scmp.eq.s32.totalorder %s17, 1
    %p40 = por %p38, %p39
    %p42 = scmp.ne.s32.totalorder %s25, %s41
    %p43 = scmp.eq.s32.totalorder %s17, 0
    %p44 = por %p42, %p43
    %s45 = ssub.s32 %s11, %s18
    %p46 = scmp.eq.s32.totalorder %s45, 0
    %s48 = sadd.s32 %s47, 1
    %s49 = scalar_select %p46, %s47, %s48
    %p52 = pneg %p46
    %p53 = scmp.eq.s32.totalorder %s11, 1
    %p54 = por %p52, %p53
    %p55 = scmp.ne.s32.totalorder %s47, %s50
    %p56 = scmp.eq.s32.totalorder %s11, 0
    %p57 = por %p55, %p56
    %p58 = scmp.ne.s32.totalorder %s47, %s50
    %p59 = scmp.eq.s32.totalorder %s16, 1
    %p60 = por %p58, %p59
    %p61 = scmp.ne.s32.totalorder %s50, %s51
    %p62 = scmp.eq.s32.totalorder %s16, 0
    %p63 = por %p61, %p62
    %p64 = scmp.ne.s32.totalorder %s50, %s51
    %p65 = scmp.eq.s32.totalorder %s17, 1
    %p66 = por %p64, %p65
    %p68 = scmp.ne.s32.totalorder %s51, %s67
    %p69 = scmp.eq.s32.totalorder %s17, 0
    %p70 = por %p68, %p69
    %s71 = ssub.s32 %s11, %s18
    %p72 = scmp.eq.s32.totalorder %s71, 0
    %s74 = sadd.s32 %s73, 1
    %s75 = scalar_select %p72, %s73, %s74
    %p78 = pneg %p72
    %p79 = scmp.eq.s32.totalorder %s11, 1
    %p80 = por %p78, %p79
    %p81 = scmp.ne.s32.totalorder %s73, %s76
    %p82 = scmp.eq.s32.totalorder %s11, 0
    %p83 = por %p81, %p82
    %p84 = scmp.ne.s32.totalorder %s73, %s76
    %p85 = scmp.eq.s32.totalorder %s16, 1
    %p86 = por %p84, %p85
    %p87 = scmp.ne.s32.totalorder %s76, %s77
    %p88 = scmp.eq.s32.totalorder %s16, 0
    %p89 = por %p87, %p88
    %p90 = scmp.ne.s32.totalorder %s76, %s77
    %p91 = scmp.eq.s32.totalorder %s17, 1
    %p92 = por %p90, %p91
    %p94 = scmp.ne.s32.totalorder %s77, %s93
    %p95 = scmp.eq.s32.totalorder %s17, 0
    %p96 = por %p94, %p95
    %s97 = ssub.s32 %s11, %s18
    %p98 = scmp.eq.s32.totalorder %s97, 0
    %s100 = sadd.s32 %s99, 1
    %s101 = scalar_select %p98, %s99, %s100
    %p104 = pneg %p98
    %p105 = scmp.eq.s32.totalorder %s11, 1
    %p106 = por %p104, %p105
    %p107 = scmp.ne.s32.totalorder %s99, %s102
    %p108 = scmp.eq.s32.totalorder %s11, 0
    %p109 = por %p107, %p108
    %p110 = scmp.ne.s32.totalorder %s99, %s102
    %p111 = scmp.eq.s32.totalorder %s16, 1
    %p112 = por %p110, %p111
    %p113 = scmp.ne.s32.totalorder %s102, %s103
    %p114 = scmp.eq.s32.totalorder %s16, 0
    %p115 = por %p113, %p114
    %p116 = scmp.ne.s32.totalorder %s102, %s103
    %p117 = scmp.eq.s32.totalorder %s17, 1
    %p118 = por %p116, %p117
    %p120 = scmp.ne.s32.totalorder %s103, %s119
    %p121 = scmp.eq.s32.totalorder %s17, 0
    %p122 = por %p120, %p121
    %s123 = ssub.s32 %s11, %s18
    %p124 = scmp.eq.s32.totalorder %s123, 0
    %s126 = sadd.s32 %s125, 1
    %s127 = scalar_select %p124, %s125, %s126
    %p130 = pneg %p124
    %p131 = scmp.eq.s32.totalorder %s11, 1
    %p132 = por %p130, %p131
    %p133 = scmp.ne.s32.totalorder %s125, %s128
    %p134 = scmp.eq.s32.totalorder %s11, 0
    %p135 = por %p133, %p134
    %p136 = scmp.ne.s32.totalorder %s125, %s128
    %p137 = scmp.eq.s32.totalorder %s16, 1
    %p138 = por %p136, %p137
    %p139 = scmp.ne.s32.totalorder %s128, %s129
    %p140 = scmp.eq.s32.totalorder %s16, 0
    %p141 = por %p139, %p140
    %p142 = scmp.ne.s32.totalorder %s128, %s129
    %p143 = scmp.eq.s32.totalorder %s17, 1
    %p144 = por %p142, %p143
    %p146 = scmp.ne.s32.totalorder %s129, %s145
    %p147 = scmp.eq.s32.totalorder %s17, 0
    %p148 = por %p146, %p147
    %p149 = scmp.le.s32.totalorder 1, %s11
    %p150 = scmp.lt.s32.totalorder %s11, 3
    %p151 = pnand %p149, %p150
    %p152 = pneg %p151
    // Predicated region
    $region9: #{keypoint_outputs_forward.3} parent=5 // pred_check
      _
    $region10: #{keypoint_outputs_forward.3} parent=5 // pred_check_branch
      %154 = sbr.rel (%p151) target = $region12
    $region11: #{keypoint_outputs_forward.3} parent=5 // pred_region
      %s155 = ssub.s32 %s11, 1
    $region12: #{keypoint_outputs_forward.3} parent=5 // pred_fallthru
      _
    %p156 = scmp.lt.s32.totalorder %s11, 2
    // Predicated region
    $region13: #{keypoint_outputs_forward.3} parent=5 // pred_check
      %p157 = pneg %p156
    $region14: #{keypoint_outputs_forward.3} parent=5 // pred_check_branch
      %159 = sbr.rel (%p157) target = $region16
    $region15: #{keypoint_outputs_forward.3} parent=5 // pred_region
      // Predicated region
      $region17: #{keypoint_outputs_forward.3} parent=15 // pred_check
        %p160 = pneg %p31
      $region18: #{keypoint_outputs_forward.3} parent=15 // pred_check_branch
        %162 = sbr.rel (%p160) target = $region20
      $region19: #{keypoint_outputs_forward.3} parent=15 // pred_region
        %p163 = scmp.lt.s32.totalorder %s11, 1
        %s164 = scalar_select %p163, %s11, 1
        %s165 = smul.addr %s164, 54
        %s166 = smul.addr %s165, 8
        %s167 = scalar_lea.vmem %s0, %s166
      $region20: #{keypoint_outputs_forward.3} parent=15 // pred_fallthru
        _
    $region16: #{keypoint_outputs_forward.3} parent=5 // pred_fallthru
      _
    %p168 = scmp.le.s32.totalorder 1, %s11
    %p169 = scmp.lt.s32.totalorder %s11, 3
    %p170 = pnand %p168, %p169
    %p171 = pneg %p170
    // Predicated region
    $region21: #{keypoint_outputs_forward.3} parent=5 // pred_check
      _
    $region22: #{keypoint_outputs_forward.3} parent=5 // pred_check_branch
      %173 = sbr.rel (%p170) target = $region24
    $region23: #{keypoint_outputs_forward.3} parent=5 // pred_region
      %s174 = ssub.s32 %s11, 1
      %p175 = scmp.lt.s32.totalorder %s16, 1
      %s176 = scalar_select %p175, %s16, 1
      %s177 = smul.addr %s176, 54
      %s178 = smul.addr %s177, 8
      %s179 = scalar_lea.vmem %s0, %s178
      %p180 = pneg %p37
      %p181 = pneg %p34
      %p182 = pneg %p63
      %p183 = pneg %p60
      %p184 = scmp.lt.s32.totalorder %s16, 1
      %s185 = scalar_select %p184, %s16, 1
      %s186 = smul.addr %s185, 32
      %s187 = smul.addr %s186, 8
      %s188 = scalar_lea.vmem %s1, %s187
      %p189 = pneg %p89
      %p190 = pneg %p86
      %p191 = scmp.lt.s32.totalorder %s16, 1
      %s192 = scalar_select %p191, %s16, 1
      %s193 = smul.addr %s192, 32
      %s194 = smul.addr %s193, 8
      %s195 = scalar_lea.vmem %s2, %s194
      %p196 = pneg %p115
      %p197 = pneg %p112
      %p198 = scmp.lt.s32.totalorder %s16, 1
      %s199 = scalar_select %p198, %s16, 1
      %s200 = smul.addr %s199, 32
      %s201 = smul.addr %s200, 8
      %s202 = scalar_lea.vmem %s3, %s201
      %p203 = pneg %p141
      %p204 = pneg %p138
      %p205 = scmp.lt.s32.totalorder %s16, 1
      %s206 = scalar_select %p205, %s16, 1
      %s207 = smul.addr %s206, 32
      %s208 = smul.addr %s207, 8
      %s209 = scalar_lea.vmem %s4, %s208
      %p210 = scmp.lt.s32.totalorder %s16, 1
      %s211 = scalar_select %p210, %s16, 1
      %s212 = smul.addr %s211, 54
      %s213 = smul.addr %s212, 8
      %s214 = scalar_lea.vmem %s0, %s213
      %p215 = scmp.lt.s32.totalorder %s16, 1
      %s216 = scalar_select %p215, %s16, 1
      %s217 = smul.addr %s216, 32
      %s218 = smul.addr %s217, 8
      %s219 = scalar_lea.vmem %s1, %s218
      %p220 = scmp.lt.s32.totalorder %s16, 1
      %s221 = scalar_select %p220, %s16, 1
      %s222 = smul.addr %s221, 32
      %s223 = smul.addr %s222, 8
      %s224 = scalar_lea.vmem %s2, %s223
      %p225 = scmp.lt.s32.totalorder %s16, 1
      %s226 = scalar_select %p225, %s16, 1
      %s227 = smul.addr %s226, 32
      %s228 = smul.addr %s227, 8
      %s229 = scalar_lea.vmem %s3, %s228
      %p230 = scmp.lt.s32.totalorder %s16, 1
      %s231 = scalar_select %p230, %s16, 1
      %s232 = smul.addr %s231, 32
      %s233 = smul.addr %s232, 8
      %s234 = scalar_lea.vmem %s4, %s233
      %v235 = vld [vmem:[%s214] sm:$0xff]
      %v236 = vld [vmem:[%s214 + $0x8] sm:$0xff]
      %v237 = vld [vmem:[%s214 + $0x18] sm:$0xff]
      %v238 = vld [vmem:[%s214 + $0x20] sm:$0xff]
      %v239 = vld [vmem:[%s214 + $0x30] sm:$0xff]
      %v240 = vld [vmem:[%s214 + $0x38] sm:$0xff]
      %v241 = vld [vmem:[%s214 + $0x48] sm:$0xff]
      %v242 = vld [vmem:[%s214 + $0x50] sm:$0xff]
      %v243 = vld [vmem:[%s214 + $0x60] sm:$0xff]
      %v244 = vld [vmem:[%s214 + $0x68] sm:$0xff]
      %v245 = vld [vmem:[%s214 + $0x78] sm:$0xff]
      %v246 = vld [vmem:[%s214 + $0x80] sm:$0xff]
      %v247 = vld [vmem:[%s214 + $0x90] sm:$0xff]
      %v248 = vld [vmem:[%s214 + $0x98] sm:$0xff]
      %v249 = vld [vmem:[%s214 + $0xa8] sm:$0xff]
      %v250 = vld [vmem:[%s214 + $0xb0] sm:$0xff]
      %v251 = vld [vmem:[%s214 + $0xc0] sm:$0xff]
      %v252 = vld [vmem:[%s214 + $0xc8] sm:$0xff]
      %v253 = vld [vmem:[%s214 + $0xd8] sm:$0xff]
      %v254 = vld [vmem:[%s214 + $0xe0] sm:$0xff]
      %v255 = vld [vmem:[%s214 + $0xf0] sm:$0xff]
      %v256 = vld [vmem:[%s214 + $0xf8] sm:$0xff]
      %v257 = vld [vmem:[%s214 + $0x108] sm:$0xff]
      %v258 = vld [vmem:[%s214 + $0x110] sm:$0xff]
      %v259 = vld [vmem:[%s214 + $0x120] sm:$0xff]
      %v260 = vld [vmem:[%s214 + $0x128] sm:$0xff]
      %v261 = vld [vmem:[%s214 + $0x138] sm:$0xff]
      %v262 = vld [vmem:[%s214 + $0x140] sm:$0xff]
      %v263 = vld [vmem:[%s214 + $0x150] sm:$0xff]
      %v264 = vld [vmem:[%s214 + $0x158] sm:$0xff]
      %v265 = vld [vmem:[%s214 + $0x168] sm:$0xff]
      %v266 = vld [vmem:[%s214 + $0x170] sm:$0xff]
      %v267 = vmul.f32 %v235, 0.0625
      %v268 = vmul.f32 %v236, 0.0625
      %v269 = vmul.f32 %v237, 0.0625
      %v270 = vmul.f32 %v238, 0.0625
      %v271 = vmul.f32 %v239, 0.0625
      %v272 = vmul.f32 %v240, 0.0625
      %v273 = vmul.f32 %v241, 0.0625
      %v274 = vmul.f32 %v242, 0.0625
      %v275 = vmul.f32 %v243, 0.0625
      %v276 = vmul.f32 %v244, 0.0625
      %v277 = vmul.f32 %v245, 0.0625
      %v278 = vmul.f32 %v246, 0.0625
      %v279 = vmul.f32 %v247, 0.0625
      %v280 = vmul.f32 %v248, 0.0625
      %v281 = vmul.f32 %v249, 0.0625
      %v282 = vmul.f32 %v250, 0.0625
      %v283 = vmul.f32 %v251, 0.0625
      %v284 = vmul.f32 %v252, 0.0625
      %v285 = vmul.f32 %v253, 0.0625
      %v286 = vmul.f32 %v254, 0.0625
      %v287 = vmul.f32 %v255, 0.0625
      %v288 = vmul.f32 %v256, 0.0625
      %v289 = vmul.f32 %v257, 0.0625
      %v290 = vmul.f32 %v258, 0.0625
      %v291 = vmul.f32 %v259, 0.0625
      %v292 = vmul.f32 %v260, 0.0625
      %v293 = vmul.f32 %v261, 0.0625
      %v294 = vmul.f32 %v262, 0.0625
      %v295 = vmul.f32 %v263, 0.0625
      %v296 = vmul.f32 %v264, 0.0625
      %v297 = vmul.f32 %v265, 0.0625
      %v298 = vmul.f32 %v266, 0.0625
      %v299 = vld [vmem:[%s214 + $0x1] sm:$0xff]
      %v300 = vld [vmem:[%s214 + $0x9] sm:$0xff]
      %v301 = vld [vmem:[%s214 + $0x19] sm:$0xff]
      %v302 = vld [vmem:[%s214 + $0x21] sm:$0xff]
      %v303 = vld [vmem:[%s214 + $0x31] sm:$0xff]
      %v304 = vld [vmem:[%s214 + $0x39] sm:$0xff]
      %v305 = vld [vmem:[%s214 + $0x49] sm:$0xff]
      %v306 = vld [vmem:[%s214 + $0x51] sm:$0xff]
      %v307 = vld [vmem:[%s214 + $0x61] sm:$0xff]
      %v308 = vld [vmem:[%s214 + $0x69] sm:$0xff]
      %v309 = vld [vmem:[%s214 + $0x79] sm:$0xff]
      %v310 = vld [vmem:[%s214 + $0x81] sm:$0xff]
      %v311 = vld [vmem:[%s214 + $0x91] sm:$0xff]
      %v312 = vld [vmem:[%s214 + $0x99] sm:$0xff]
      %v313 = vld [vmem:[%s214 + $0xa9] sm:$0xff]
      %v314 = vld [vmem:[%s214 + $0xb1] sm:$0xff]
      %v315 = vld [vmem:[%s214 + $0xc1] sm:$0xff]
      %v316 = vld [vmem:[%s214 + $0xc9] sm:$0xff]
      %v317 = vld [vmem:[%s214 + $0xd9] sm:$0xff]
      %v318 = vld [vmem:[%s214 + $0xe1] sm:$0xff]
      %v319 = vld [vmem:[%s214 + $0xf1] sm:$0xff]
      %v320 = vld [vmem:[%s214 + $0xf9] sm:$0xff]
      %v321 = vld [vmem:[%s214 + $0x109] sm:$0xff]
      %v322 = vld [vmem:[%s214 + $0x111] sm:$0xff]
      %v323 = vld [vmem:[%s214 + $0x121] sm:$0xff]
      %v324 = vld [vmem:[%s214 + $0x129] sm:$0xff]
      %v325 = vld [vmem:[%s214 + $0x139] sm:$0xff]
      %v326 = vld [vmem:[%s214 + $0x141] sm:$0xff]
      %v327 = vld [vmem:[%s214 + $0x151] sm:$0xff]
      %v328 = vld [vmem:[%s214 + $0x159] sm:$0xff]
      %v329 = vld [vmem:[%s214 + $0x169] sm:$0xff]
      %v330 = vld [vmem:[%s214 + $0x171] sm:$0xff]
      %v331 = vmul.f32 %v299, 0.1875
      %v332 = vmul.f32 %v300, 0.1875
      %v333 = vmul.f32 %v301, 0.1875
      %v334 = vmul.f32 %v302, 0.1875
      %v335 = vmul.f32 %v303, 0.1875
      %v336 = vmul.f32 %v304, 0.1875
      %v337 = vmul.f32 %v305, 0.1875
      %v338 = vmul.f32 %v306, 0.1875
      %v339 = vmul.f32 %v307, 0.1875
      %v340 = vmul.f32 %v308, 0.1875
      %v341 = vmul.f32 %v309, 0.1875
      %v342 = vmul.f32 %v310, 0.1875
      %v343 = vmul.f32 %v311, 0.1875
      %v344 = vmul.f32 %v312, 0.1875
      %v345 = vmul.f32 %v313, 0.1875
      %v346 = vmul.f32 %v314, 0.1875
      %v347 = vmul.f32 %v315, 0.1875
      %v348 = vmul.f32 %v316, 0.1875
      %v349 = vmul.f32 %v317, 0.1875
      %v350 = vmul.f32 %v318, 0.1875
      %v351 = vmul.f32 %v319, 0.1875
      %v352 = vmul.f32 %v320, 0.1875
      %v353 = vmul.f32 %v321, 0.1875
      %v354 = vmul.f32 %v322, 0.1875
      %v355 = vmul.f32 %v323, 0.1875
      %v356 = vmul.f32 %v324, 0.1875
      %v357 = vmul.f32 %v325, 0.1875
      %v358 = vmul.f32 %v326, 0.1875
      %v359 = vmul.f32 %v327, 0.1875
      %v360 = vmul.f32 %v328, 0.1875
      %v361 = vmul.f32 %v329, 0.1875
      %v362 = vmul.f32 %v330, 0.1875
      %v363 = vadd.f32 %v267, %v331
      %v364 = vadd.f32 %v268, %v332
      %v365 = vadd.f32 %v269, %v333
      %v366 = vadd.f32 %v270, %v334
      %v367 = vadd.f32 %v271, %v335
      %v368 = vadd.f32 %v272, %v336
      %v369 = vadd.f32 %v273, %v337
      %v370 = vadd.f32 %v274, %v338
      %v371 = vadd.f32 %v275, %v339
      %v372 = vadd.f32 %v276, %v340
      %v373 = vadd.f32 %v277, %v341
      %v374 = vadd.f32 %v278, %v342
      %v375 = vadd.f32 %v279, %v343
      %v376 = vadd.f32 %v280, %v344
      %v377 = vadd.f32 %v281, %v345
      %v378 = vadd.f32 %v282, %v346
      %v379 = vadd.f32 %v283, %v347
      %v380 = vadd.f32 %v284, %v348
      %v381 = vadd.f32 %v285, %v349
      %v382 = vadd.f32 %v286, %v350
      %v383 = vadd.f32 %v287, %v351
      %v384 = vadd.f32 %v288, %v352
      %v385 = vadd.f32 %v289, %v353
      %v386 = vadd.f32 %v290, %v354
      %v387 = vadd.f32 %v291, %v355
      %v388 = vadd.f32 %v292, %v356
      %v389 = vadd.f32 %v293, %v357
      %v390 = vadd.f32 %v294, %v358
      %v391 = vadd.f32 %v295, %v359
      %v392 = vadd.f32 %v296, %v360
      %v393 = vadd.f32 %v297, %v361
      %v394 = vadd.f32 %v298, %v362
      %s395 = scalar_lea.vmem %s214, 24
      %v396 = vld [vmem:[%s395] sm:$0xff]
      %v397 = vld [vmem:[%s395 + $0x8] sm:$0xff]
      %v398 = vld [vmem:[%s395 + $0x18] sm:$0xff]
      %v399 = vld [vmem:[%s395 + $0x20] sm:$0xff]
      %v400 = vld [vmem:[%s395 + $0x30] sm:$0xff]
      %v401 = vld [vmem:[%s395 + $0x38] sm:$0xff]
      %v402 = vld [vmem:[%s395 + $0x48] sm:$0xff]
      %v403 = vld [vmem:[%s395 + $0x50] sm:$0xff]
      %v404 = vld [vmem:[%s395 + $0x60] sm:$0xff]
      %v405 = vld [vmem:[%s395 + $0x68] sm:$0xff]
      %v406 = vld [vmem:[%s395 + $0x78] sm:$0xff]
      %v407 = vld [vmem:[%s395 + $0x80] sm:$0xff]
      %v408 = vld [vmem:[%s395 + $0x90] sm:$0xff]
      %v409 = vld [vmem:[%s395 + $0x98] sm:$0xff]
      %v410 = vld [vmem:[%s395 + $0xa8] sm:$0xff]
      %v411 = vld [vmem:[%s395 + $0xb0] sm:$0xff]
      %v412 = vld [vmem:[%s395 + $0xc0] sm:$0xff]
      %v413 = vld [vmem:[%s395 + $0xc8] sm:$0xff]
      %v414 = vld [vmem:[%s395 + $0xd8] sm:$0xff]
      %v415 = vld [vmem:[%s395 + $0xe0] sm:$0xff]
      %v416 = vld [vmem:[%s395 + $0xf0] sm:$0xff]
      %v417 = vld [vmem:[%s395 + $0xf8] sm:$0xff]
      %v418 = vld [vmem:[%s395 + $0x108] sm:$0xff]
      %v419 = vld [vmem:[%s395 + $0x110] sm:$0xff]
      %v420 = vld [vmem:[%s395 + $0x120] sm:$0xff]
      %v421 = vld [vmem:[%s395 + $0x128] sm:$0xff]
      %v422 = vld [vmem:[%s395 + $0x138] sm:$0xff]
      %v423 = vld [vmem:[%s395 + $0x140] sm:$0xff]
      %v424 = vld [vmem:[%s395 + $0x150] sm:$0xff]
      %v425 = vld [vmem:[%s395 + $0x158] sm:$0xff]
      %v426 = vld [vmem:[%s395 + $0x168] sm:$0xff]
      %v427 = vld [vmem:[%s395 + $0x170] sm:$0xff]
      %v428 = vmul.f32 %v396, 0.1875
      %v429 = vmul.f32 %v397, 0.1875
      %v430 = vmul.f32 %v398, 0.1875
      %v431 = vmul.f32 %v399, 0.1875
      %v432 = vmul.f32 %v400, 0.1875
      %v433 = vmul.f32 %v401, 0.1875
      %v434 = vmul.f32 %v402, 0.1875
      %v435 = vmul.f32 %v403, 0.1875
      %v436 = vmul.f32 %v404, 0.1875
      %v437 = vmul.f32 %v405, 0.1875
      %v438 = vmul.f32 %v406, 0.1875
      %v439 = vmul.f32 %v407, 0.1875
      %v440 = vmul.f32 %v408, 0.1875
      %v441 = vmul.f32 %v409, 0.1875
      %v442 = vmul.f32 %v410, 0.1875
      %v443 = vmul.f32 %v411, 0.1875
      %v444 = vmul.f32 %v412, 0.1875
      %v445 = vmul.f32 %v413, 0.1875
      %v446 = vmul.f32 %v414, 0.1875
      %v447 = vmul.f32 %v415, 0.1875
      %v448 = vmul.f32 %v416, 0.1875
      %v449 = vmul.f32 %v417, 0.1875
      %v450 = vmul.f32 %v418, 0.1875
      %v451 = vmul.f32 %v419, 0.1875
      %v452 = vmul.f32 %v420, 0.1875
      %v453 = vmul.f32 %v421, 0.1875
      %v454 = vmul.f32 %v422, 0.1875
      %v455 = vmul.f32 %v423, 0.1875
      %v456 = vmul.f32 %v424, 0.1875
      %v457 = vmul.f32 %v425, 0.1875
      %v458 = vmul.f32 %v426, 0.1875
      %v459 = vmul.f32 %v427, 0.1875
      %v460 = vadd.f32 %v363, %v428
      %v461 = vadd.f32 %v364, %v429
      %v462 = vadd.f32 %v365, %v430
      %v463 = vadd.f32 %v366, %v431
      %v464 = vadd.f32 %v367, %v432
      %v465 = vadd.f32 %v368, %v433
      %v466 = vadd.f32 %v369, %v434
      %v467 = vadd.f32 %v370, %v435
      %v468 = vadd.f32 %v371, %v436
      %v469 = vadd.f32 %v372, %v437
      %v470 = vadd.f32 %v373, %v438
      %v471 = vadd.f32 %v374, %v439
      %v472 = vadd.f32 %v375, %v440
      %v473 = vadd.f32 %v376, %v441
      %v474 = vadd.f32 %v377, %v442
      %v475 = vadd.f32 %v378, %v443
      %v476 = vadd.f32 %v379, %v444
      %v477 = vadd.f32 %v380, %v445
      %v478 = vadd.f32 %v381, %v446
      %v479 = vadd.f32 %v382, %v447
      %v480 = vadd.f32 %v383, %v448
      %v481 = vadd.f32 %v384, %v449
      %v482 = vadd.f32 %v385, %v450
      %v483 = vadd.f32 %v386, %v451
      %v484 = vadd.f32 %v387, %v452
      %v485 = vadd.f32 %v388, %v453
      %v486 = vadd.f32 %v389, %v454
      %v487 = vadd.f32 %v390, %v455
      %v488 = vadd.f32 %v391, %v456
      %v489 = vadd.f32 %v392, %v457
      %v490 = vadd.f32 %v393, %v458
      %v491 = vadd.f32 %v394, %v459
      %v492 = vld [vmem:[%s395 + $0x1] sm:$0xff]
      %v493 = vld [vmem:[%s395 + $0x9] sm:$0xff]
      %v494 = vld [vmem:[%s395 + $0x19] sm:$0xff]
      %v495 = vld [vmem:[%s395 + $0x21] sm:$0xff]
      %v496 = vld [vmem:[%s395 + $0x31] sm:$0xff]
      %v497 = vld [vmem:[%s395 + $0x39] sm:$0xff]
      %v498 = vld [vmem:[%s395 + $0x49] sm:$0xff]
      %v499 = vld [vmem:[%s395 + $0x51] sm:$0xff]
      %v500 = vld [vmem:[%s395 + $0x61] sm:$0xff]
      %v501 = vld [vmem:[%s395 + $0x69] sm:$0xff]
      %v502 = vld [vmem:[%s395 + $0x79] sm:$0xff]
      %v503 = vld [vmem:[%s395 + $0x81] sm:$0xff]
      %v504 = vld [vmem:[%s395 + $0x91] sm:$0xff]
      %v505 = vld [vmem:[%s395 + $0x99] sm:$0xff]
      %v506 = vld [vmem:[%s395 + $0xa9] sm:$0xff]
      %v507 = vld [vmem:[%s395 + $0xb1] sm:$0xff]
      %v508 = vld [vmem:[%s395 + $0xc1] sm:$0xff]
      %v509 = vld [vmem:[%s395 + $0xc9] sm:$0xff]
      %v510 = vld [vmem:[%s395 + $0xd9] sm:$0xff]
      %v511 = vld [vmem:[%s395 + $0xe1] sm:$0xff]
      %v512 = vld [vmem:[%s395 + $0xf1] sm:$0xff]
      %v513 = vld [vmem:[%s395 + $0xf9] sm:$0xff]
      %v514 = vld [vmem:[%s395 + $0x109] sm:$0xff]
      %v515 = vld [vmem:[%s395 + $0x111] sm:$0xff]
      %v516 = vld [vmem:[%s395 + $0x121] sm:$0xff]
      %v517 = vld [vmem:[%s395 + $0x129] sm:$0xff]
      %v518 = vld [vmem:[%s395 + $0x139] sm:$0xff]
      %v519 = vld [vmem:[%s395 + $0x141] sm:$0xff]
      %v520 = vld [vmem:[%s395 + $0x151] sm:$0xff]
      %v521 = vld [vmem:[%s395 + $0x159] sm:$0xff]
      %v522 = vld [vmem:[%s395 + $0x169] sm:$0xff]
      %v523 = vld [vmem:[%s395 + $0x171] sm:$0xff]
      %v524 = vmul.f32 %v492, 0.5625
      %v525 = vmul.f32 %v493, 0.5625
      %v526 = vmul.f32 %v494, 0.5625
      %v527 = vmul.f32 %v495, 0.5625
      %v528 = vmul.f32 %v496, 0.5625
      %v529 = vmul.f32 %v497, 0.5625
      %v530 = vmul.f32 %v498, 0.5625
      %v531 = vmul.f32 %v499, 0.5625
      %v532 = vmul.f32 %v500, 0.5625
      %v533 = vmul.f32 %v501, 0.5625
      %v534 = vmul.f32 %v502, 0.5625
      %v535 = vmul.f32 %v503, 0.5625
      %v536 = vmul.f32 %v504, 0.5625
      %v537 = vmul.f32 %v505, 0.5625
      %v538 = vmul.f32 %v506, 0.5625
      %v539 = vmul.f32 %v507, 0.5625
      %v540 = vmul.f32 %v508, 0.5625
      %v541 = vmul.f32 %v509, 0.5625
      %v542 = vmul.f32 %v510, 0.5625
      %v543 = vmul.f32 %v511, 0.5625
      %v544 = vmul.f32 %v512, 0.5625
      %v545 = vmul.f32 %v513, 0.5625
      %v546 = vmul.f32 %v514, 0.5625
      %v547 = vmul.f32 %v515, 0.5625
      %v548 = vmul.f32 %v516, 0.5625
      %v549 = vmul.f32 %v517, 0.5625
      %v550 = vmul.f32 %v518, 0.5625
      %v551 = vmul.f32 %v519, 0.5625
      %v552 = vmul.f32 %v520, 0.5625
      %v553 = vmul.f32 %v521, 0.5625
      %v554 = vmul.f32 %v522, 0.5625
      %v555 = vmul.f32 %v523, 0.5625
      %v556 = vadd.f32 %v460, %v524
      %v557 = vadd.f32 %v461, %v525
      %v558 = vadd.f32 %v462, %v526
      %v559 = vadd.f32 %v463, %v527
      %v560 = vadd.f32 %v464, %v528
      %v561 = vadd.f32 %v465, %v529
      %v562 = vadd.f32 %v466, %v530
      %v563 = vadd.f32 %v467, %v531
      %v564 = vadd.f32 %v468, %v532
      %v565 = vadd.f32 %v469, %v533
      %v566 = vadd.f32 %v470, %v534
      %v567 = vadd.f32 %v471, %v535
      %v568 = vadd.f32 %v472, %v536
      %v569 = vadd.f32 %v473, %v537
      %v570 = vadd.f32 %v474, %v538
      %v571 = vadd.f32 %v475, %v539
      %v572 = vadd.f32 %v476, %v540
      %v573 = vadd.f32 %v477, %v541
      %v574 = vadd.f32 %v478, %v542
      %v575 = vadd.f32 %v479, %v543
      %v576 = vadd.f32 %v480, %v544
      %v577 = vadd.f32 %v481, %v545
      %v578 = vadd.f32 %v482, %v546
      %v579 = vadd.f32 %v483, %v547
      %v580 = vadd.f32 %v484, %v548
      %v581 = vadd.f32 %v485, %v549
      %v582 = vadd.f32 %v486, %v550
      %v583 = vadd.f32 %v487, %v551
      %v584 = vadd.f32 %v488, %v552
      %v585 = vadd.f32 %v489, %v553
      %v586 = vadd.f32 %v490, %v554
      %v587 = vadd.f32 %v491, %v555
      %vm588 = vcmask 138240
      %589 = vst.msk [vmem:[%s219] sm:$0xff] %vm588, %v556
      %590 = vst.msk [vmem:[%s219 + $0x8] sm:$0xff] %vm588, %v557
      %591 = vst.msk [vmem:[%s219 + $0x10] sm:$0xff] %vm588, %v558
      %592 = vst.msk [vmem:[%s219 + $0x18] sm:$0xff] %vm588, %v559
      %593 = vst.msk [vmem:[%s219 + $0x20] sm:$0xff] %vm588, %v560
      %594 = vst.msk [vmem:[%s219 + $0x28] sm:$0xff] %vm588, %v561
      %595 = vst.msk [vmem:[%s219 + $0x30] sm:$0xff] %vm588, %v562
      %596 = vst.msk [vmem:[%s219 + $0x38] sm:$0xff] %vm588, %v563
      %597 = vst.msk [vmem:[%s219 + $0x40] sm:$0xff] %vm588, %v564
      %598 = vst.msk [vmem:[%s219 + $0x48] sm:$0xff] %vm588, %v565
      %599 = vst.msk [vmem:[%s219 + $0x50] sm:$0xff] %vm588, %v566
      %600 = vst.msk [vmem:[%s219 + $0x58] sm:$0xff] %vm588, %v567
      %601 = vst.msk [vmem:[%s219 + $0x60] sm:$0xff] %vm588, %v568
      %602 = vst.msk [vmem:[%s219 + $0x68] sm:$0xff] %vm588, %v569
      %603 = vst.msk [vmem:[%s219 + $0x70] sm:$0xff] %vm588, %v570
      %604 = vst.msk [vmem:[%s219 + $0x78] sm:$0xff] %vm588, %v571
      %605 = vst.msk [vmem:[%s219 + $0x80] sm:$0xff] %vm588, %v572
      %606 = vst.msk [vmem:[%s219 + $0x88] sm:$0xff] %vm588, %v573
      %607 = vst.msk [vmem:[%s219 + $0x90] sm:$0xff] %vm588, %v574
      %608 = vst.msk [vmem:[%s219 + $0x98] sm:$0xff] %vm588, %v575
      %609 = vst.msk [vmem:[%s219 + $0xa0] sm:$0xff] %vm588, %v576
      %610 = vst.msk [vmem:[%s219 + $0xa8] sm:$0xff] %vm588, %v577
      %611 = vst.msk [vmem:[%s219 + $0xb0] sm:$0xff] %vm588, %v578
      %612 = vst.msk [vmem:[%s219 + $0xb8] sm:$0xff] %vm588, %v579
      %613 = vst.msk [vmem:[%s219 + $0xc0] sm:$0xff] %vm588, %v580
      %614 = vst.msk [vmem:[%s219 + $0xc8] sm:$0xff] %vm588, %v581
      %615 = vst.msk [vmem:[%s219 + $0xd0] sm:$0xff] %vm588, %v582
      %616 = vst.msk [vmem:[%s219 + $0xd8] sm:$0xff] %vm588, %v583
      %617 = vst.msk [vmem:[%s219 + $0xe0] sm:$0xff] %vm588, %v584
      %618 = vst.msk [vmem:[%s219 + $0xe8] sm:$0xff] %vm588, %v585
      %619 = vst.msk [vmem:[%s219 + $0xf0] sm:$0xff] %vm588, %v586
      %620 = vst.msk [vmem:[%s219 + $0xf8] sm:$0xff] %vm588, %v587
      %v621 = vld [vmem:[%s214 + $0x1] sm:$0xff]
      %v622 = vld [vmem:[%s214 + $0x9] sm:$0xff]
      %v623 = vld [vmem:[%s214 + $0x19] sm:$0xff]
      %v624 = vld [vmem:[%s214 + $0x21] sm:$0xff]
      %v625 = vld [vmem:[%s214 + $0x31] sm:$0xff]
      %v626 = vld [vmem:[%s214 + $0x39] sm:$0xff]
      %v627 = vld [vmem:[%s214 + $0x49] sm:$0xff]
      %v628 = vld [vmem:[%s214 + $0x51] sm:$0xff]
      %v629 = vld [vmem:[%s214 + $0x61] sm:$0xff]
      %v630 = vld [vmem:[%s214 + $0x69] sm:$0xff]
      %v631 = vld [vmem:[%s214 + $0x79] sm:$0xff]
      %v632 = vld [vmem:[%s214 + $0x81] sm:$0xff]
      %v633 = vld [vmem:[%s214 + $0x91] sm:$0xff]
      %v634 = vld [vmem:[%s214 + $0x99] sm:$0xff]
      %v635 = vld [vmem:[%s214 + $0xa9] sm:$0xff]
      %v636 = vld [vmem:[%s214 + $0xb1] sm:$0xff]
      %v637 = vld [vmem:[%s214 + $0xc1] sm:$0xff]
      %v638 = vld [vmem:[%s214 + $0xc9] sm:$0xff]
      %v639 = vld [vmem:[%s214 + $0xd9] sm:$0xff]
      %v640 = vld [vmem:[%s214 + $0xe1] sm:$0xff]
      %v641 = vld [vmem:[%s214 + $0xf1] sm:$0xff]
      %v642 = vld [vmem:[%s214 + $0xf9] sm:$0xff]
      %v643 = vld [vmem:[%s214 + $0x109] sm:$0xff]
      %v644 = vld [vmem:[%s214 + $0x111] sm:$0xff]
      %v645 = vld [vmem:[%s214 + $0x121] sm:$0xff]
      %v646 = vld [vmem:[%s214 + $0x129] sm:$0xff]
      %v647 = vld [vmem:[%s214 + $0x139] sm:$0xff]
      %v648 = vld [vmem:[%s214 + $0x141] sm:$0xff]
      %v649 = vld [vmem:[%s214 + $0x151] sm:$0xff]
      %v650 = vld [vmem:[%s214 + $0x159] sm:$0xff]
      %v651 = vld [vmem:[%s214 + $0x169] sm:$0xff]
      %v652 = vld [vmem:[%s214 + $0x171] sm:$0xff]
      %v653 = vmul.f32 %v621, 0.1875
      %v654 = vmul.f32 %v622, 0.1875
      %v655 = vmul.f32 %v623, 0.1875
      %v656 = vmul.f32 %v624, 0.1875
      %v657 = vmul.f32 %v625, 0.1875
      %v658 = vmul.f32 %v626, 0.1875
      %v659 = vmul.f32 %v627, 0.1875
      %v660 = vmul.f32 %v628, 0.1875
      %v661 = vmul.f32 %v629, 0.1875
      %v662 = vmul.f32 %v630, 0.1875
      %v663 = vmul.f32 %v631, 0.1875
      %v664 = vmul.f32 %v632, 0.1875
      %v665 = vmul.f32 %v633, 0.1875
      %v666 = vmul.f32 %v634, 0.1875
      %v667 = vmul.f32 %v635, 0.1875
      %v668 = vmul.f32 %v636, 0.1875
      %v669 = vmul.f32 %v637, 0.1875
      %v670 = vmul.f32 %v638, 0.1875
      %v671 = vmul.f32 %v639, 0.1875
      %v672 = vmul.f32 %v640, 0.1875
      %v673 = vmul.f32 %v641, 0.1875
      %v674 = vmul.f32 %v642, 0.1875
      %v675 = vmul.f32 %v643, 0.1875
      %v676 = vmul.f32 %v644, 0.1875
      %v677 = vmul.f32 %v645, 0.1875
      %v678 = vmul.f32 %v646, 0.1875
      %v679 = vmul.f32 %v647, 0.1875
      %v680 = vmul.f32 %v648, 0.1875
      %v681 = vmul.f32 %v649, 0.1875
      %v682 = vmul.f32 %v650, 0.1875
      %v683 = vmul.f32 %v651, 0.1875
      %v684 = vmul.f32 %v652, 0.1875
      %v685 = vld [vmem:[%s214 + $0x2] sm:$0xff]
      %v686 = vld [vmem:[%s214 + $0xa] sm:$0xff]
      %v687 = vld [vmem:[%s214 + $0x1a] sm:$0xff]
      %v688 = vld [vmem:[%s214 + $0x22] sm:$0xff]
      %v689 = vld [vmem:[%s214 + $0x32] sm:$0xff]
      %v690 = vld [vmem:[%s214 + $0x3a] sm:$0xff]
      %v691 = vld [vmem:[%s214 + $0x4a] sm:$0xff]
      %v692 = vld [vmem:[%s214 + $0x52] sm:$0xff]
      %v693 = vld [vmem:[%s214 + $0x62] sm:$0xff]
      %v694 = vld [vmem:[%s214 + $0x6a] sm:$0xff]
      %v695 = vld [vmem:[%s214 + $0x7a] sm:$0xff]
      %v696 = vld [vmem:[%s214 + $0x82] sm:$0xff]
      %v697 = vld [vmem:[%s214 + $0x92] sm:$0xff]
      %v698 = vld [vmem:[%s214 + $0x9a] sm:$0xff]
      %v699 = vld [vmem:[%s214 + $0xaa] sm:$0xff]
      %v700 = vld [vmem:[%s214 + $0xb2] sm:$0xff]
      %v701 = vld [vmem:[%s214 + $0xc2] sm:$0xff]
      %v702 = vld [vmem:[%s214 + $0xca] sm:$0xff]
      %v703 = vld [vmem:[%s214 + $0xda] sm:$0xff]
      %v704 = vld [vmem:[%s214 + $0xe2] sm:$0xff]
      %v705 = vld [vmem:[%s214 + $0xf2] sm:$0xff]
      %v706 = vld [vmem:[%s214 + $0xfa] sm:$0xff]
      %v707 = vld [vmem:[%s214 + $0x10a] sm:$0xff]
      %v708 = vld [vmem:[%s214 + $0x112] sm:$0xff]
      %v709 = vld [vmem:[%s214 + $0x122] sm:$0xff]
      %v710 = vld [vmem:[%s214 + $0x12a] sm:$0xff]
      %v711 = vld [vmem:[%s214 + $0x13a] sm:$0xff]
      %v712 = vld [vmem:[%s214 + $0x142] sm:$0xff]
      %v713 = vld [vmem:[%s214 + $0x152] sm:$0xff]
      %v714 = vld [vmem:[%s214 + $0x15a] sm:$0xff]
      %v715 = vld [vmem:[%s214 + $0x16a] sm:$0xff]
      %v716 = vld [vmem:[%s214 + $0x172] sm:$0xff]
      %v717 = vmul.f32 %v685, 0.0625
      %v718 = vmul.f32 %v686, 0.0625
      %v719 = vmul.f32 %v687, 0.0625
      %v720 = vmul.f32 %v688, 0.0625
      %v721 = vmul.f32 %v689, 0.0625
      %v722 = vmul.f32 %v690, 0.0625
      %v723 = vmul.f32 %v691, 0.0625
      %v724 = vmul.f32 %v692, 0.0625
      %v725 = vmul.f32 %v693, 0.0625
      %v726 = vmul.f32 %v694, 0.0625
      %v727 = vmul.f32 %v695, 0.0625
      %v728 = vmul.f32 %v696, 0.0625
      %v729 = vmul.f32 %v697, 0.0625
      %v730 = vmul.f32 %v698, 0.0625
      %v731 = vmul.f32 %v699, 0.0625
      %v732 = vmul.f32 %v700, 0.0625
      %v733 = vmul.f32 %v701, 0.0625
      %v734 = vmul.f32 %v702, 0.0625
      %v735 = vmul.f32 %v703, 0.0625
      %v736 = vmul.f32 %v704, 0.0625
      %v737 = vmul.f32 %v705, 0.0625
      %v738 = vmul.f32 %v706, 0.0625
      %v739 = vmul.f32 %v707, 0.0625
      %v740 = vmul.f32 %v708, 0.0625
      %v741 = vmul.f32 %v709, 0.0625
      %v742 = vmul.f32 %v710, 0.0625
      %v743 = vmul.f32 %v711, 0.0625
      %v744 = vmul.f32 %v712, 0.0625
      %v745 = vmul.f32 %v713, 0.0625
      %v746 = vmul.f32 %v714, 0.0625
      %v747 = vmul.f32 %v715, 0.0625
      %v748 = vmul.f32 %v716, 0.0625
      %v749 = vadd.f32 %v653, %v717
      %v750 = vadd.f32 %v654, %v718
      %v751 = vadd.f32 %v655, %v719
      %v752 = vadd.f32 %v656, %v720
      %v753 = vadd.f32 %v657, %v721
      %v754 = vadd.f32 %v658, %v722
      %v755 = vadd.f32 %v659, %v723
      %v756 = vadd.f32 %v660, %v724
      %v757 = vadd.f32 %v661, %v725
      %v758 = vadd.f32 %v662, %v726
      %v759 = vadd.f32 %v663, %v727
      %v760 = vadd.f32 %v664, %v728
      %v761 = vadd.f32 %v665, %v729
      %v762 = vadd.f32 %v666, %v730
      %v763 = vadd.f32 %v667, %v731
      %v764 = vadd.f32 %v668, %v732
      %v765 = vadd.f32 %v669, %v733
      %v766 = vadd.f32 %v670, %v734
      %v767 = vadd.f32 %v671, %v735
      %v768 = vadd.f32 %v672, %v736
      %v769 = vadd.f32 %v673, %v737
      %v770 = vadd.f32 %v674, %v738
      %v771 = vadd.f32 %v675, %v739
      %v772 = vadd.f32 %v676, %v740
      %v773 = vadd.f32 %v677, %v741
      %v774 = vadd.f32 %v678, %v742
      %v775 = vadd.f32 %v679, %v743
      %v776 = vadd.f32 %v680, %v744
      %v777 = vadd.f32 %v681, %v745
      %v778 = vadd.f32 %v682, %v746
      %v779 = vadd.f32 %v683, %v747
      %v780 = vadd.f32 %v684, %v748
      %v781 = vld [vmem:[%s395 + $0x1] sm:$0xff]
      %v782 = vld [vmem:[%s395 + $0x9] sm:$0xff]
      %v783 = vld [vmem:[%s395 + $0x19] sm:$0xff]
      %v784 = vld [vmem:[%s395 + $0x21] sm:$0xff]
      %v785 = vld [vmem:[%s395 + $0x31] sm:$0xff]
      %v786 = vld [vmem:[%s395 + $0x39] sm:$0xff]
      %v787 = vld [vmem:[%s395 + $0x49] sm:$0xff]
      %v788 = vld [vmem:[%s395 + $0x51] sm:$0xff]
      %v789 = vld [vmem:[%s395 + $0x61] sm:$0xff]
      %v790 = vld [vmem:[%s395 + $0x69] sm:$0xff]
      %v791 = vld [vmem:[%s395 + $0x79] sm:$0xff]
      %v792 = vld [vmem:[%s395 + $0x81] sm:$0xff]
      %v793 = vld [vmem:[%s395 + $0x91] sm:$0xff]
      %v794 = vld [vmem:[%s395 + $0x99] sm:$0xff]
      %v795 = vld [vmem:[%s395 + $0xa9] sm:$0xff]
      %v796 = vld [vmem:[%s395 + $0xb1] sm:$0xff]
      %v797 = vld [vmem:[%s395 + $0xc1] sm:$0xff]
      %v798 = vld [vmem:[%s395 + $0xc9] sm:$0xff]
      %v799 = vld [vmem:[%s395 + $0xd9] sm:$0xff]
      %v800 = vld [vmem:[%s395 + $0xe1] sm:$0xff]
      %v801 = vld [vmem:[%s395 + $0xf1] sm:$0xff]
      %v802 = vld [vmem:[%s395 + $0xf9] sm:$0xff]
      %v803 = vld [vmem:[%s395 + $0x109] sm:$0xff]
      %v804 = vld [vmem:[%s395 + $0x111] sm:$0xff]
      %v805 = vld [vmem:[%s395 + $0x121] sm:$0xff]
      %v806 = vld [vmem:[%s395 + $0x129] sm:$0xff]
      %v807 = vld [vmem:[%s395 + $0x139] sm:$0xff]
      %v808 = vld [vmem:[%s395 + $0x141] sm:$0xff]
      %v809 = vld [vmem:[%s395 + $0x151] sm:$0xff]
      %v810 = vld [vmem:[%s395 + $0x159] sm:$0xff]
      %v811 = vld [vmem:[%s395 + $0x169] sm:$0xff]
      %v812 = vld [vmem:[%s395 + $0x171] sm:$0xff]
      %v813 = vmul.f32 %v781, 0.5625
      %v814 = vmul.f32 %v782, 0.5625
      %v815 = vmul.f32 %v783, 0.5625
      %v816 = vmul.f32 %v784, 0.5625
      %v817 = vmul.f32 %v785, 0.5625
      %v818 = vmul.f32 %v786, 0.5625
      %v819 = vmul.f32 %v787, 0.5625
      %v820 = vmul.f32 %v788, 0.5625
      %v821 = vmul.f32 %v789, 0.5625
      %v822 = vmul.f32 %v790, 0.5625
      %v823 = vmul.f32 %v791, 0.5625
      %v824 = vmul.f32 %v792, 0.5625
      %v825 = vmul.f32 %v793, 0.5625
      %v826 = vmul.f32 %v794, 0.5625
      %v827 = vmul.f32 %v795, 0.5625
      %v828 = vmul.f32 %v796, 0.5625
      %v829 = vmul.f32 %v797, 0.5625
      %v830 = vmul.f32 %v798, 0.5625
      %v831 = vmul.f32 %v799, 0.5625
      %v832 = vmul.f32 %v800, 0.5625
      %v833 = vmul.f32 %v801, 0.5625
      %v834 = vmul.f32 %v802, 0.5625
      %v835 = vmul.f32 %v803, 0.5625
      %v836 = vmul.f32 %v804, 0.5625
      %v837 = vmul.f32 %v805, 0.5625
      %v838 = vmul.f32 %v806, 0.5625
      %v839 = vmul.f32 %v807, 0.5625
      %v840 = vmul.f32 %v808, 0.5625
      %v841 = vmul.f32 %v809, 0.5625
      %v842 = vmul.f32 %v810, 0.5625
      %v843 = vmul.f32 %v811, 0.5625
      %v844 = vmul.f32 %v812, 0.5625
      %v845 = vadd.f32 %v749, %v813
      %v846 = vadd.f32 %v750, %v814
      %v847 = vadd.f32 %v751, %v815
      %v848 = vadd.f32 %v752, %v816
      %v849 = vadd.f32 %v753, %v817
      %v850 = vadd.f32 %v754, %v818
      %v851 = vadd.f32 %v755, %v819
      %v852 = vadd.f32 %v756, %v820
      %v853 = vadd.f32 %v757, %v821
      %v854 = vadd.f32 %v758, %v822
      %v855 = vadd.f32 %v759, %v823
      %v856 = vadd.f32 %v760, %v824
      %v857 = vadd.f32 %v761, %v825
      %v858 = vadd.f32 %v762, %v826
      %v859 = vadd.f32 %v763, %v827
      %v860 = vadd.f32 %v764, %v828
      %v861 = vadd.f32 %v765, %v829
      %v862 = vadd.f32 %v766, %v830
      %v863 = vadd.f32 %v767, %v831
      %v864 = vadd.f32 %v768, %v832
      %v865 = vadd.f32 %v769, %v833
      %v866 = vadd.f32 %v770, %v834
      %v867 = vadd.f32 %v771, %v835
      %v868 = vadd.f32 %v772, %v836
      %v869 = vadd.f32 %v773, %v837
      %v870 = vadd.f32 %v774, %v838
      %v871 = vadd.f32 %v775, %v839
      %v872 = vadd.f32 %v776, %v840
      %v873 = vadd.f32 %v777, %v841
      %v874 = vadd.f32 %v778, %v842
      %v875 = vadd.f32 %v779, %v843
      %v876 = vadd.f32 %v780, %v844
      %v877 = vld [vmem:[%s395 + $0x2] sm:$0xff]
      %v878 = vld [vmem:[%s395 + $0xa] sm:$0xff]
      %v879 = vld [vmem:[%s395 + $0x1a] sm:$0xff]
      %v880 = vld [vmem:[%s395 + $0x22] sm:$0xff]
      %v881 = vld [vmem:[%s395 + $0x32] sm:$0xff]
      %v882 = vld [vmem:[%s395 + $0x3a] sm:$0xff]
      %v883 = vld [vmem:[%s395 + $0x4a] sm:$0xff]
      %v884 = vld [vmem:[%s395 + $0x52] sm:$0xff]
      %v885 = vld [vmem:[%s395 + $0x62] sm:$0xff]
      %v886 = vld [vmem:[%s395 + $0x6a] sm:$0xff]
      %v887 = vld [vmem:[%s395 + $0x7a] sm:$0xff]
      %v888 = vld [vmem:[%s395 + $0x82] sm:$0xff]
      %v889 = vld [vmem:[%s395 + $0x92] sm:$0xff]
      %v890 = vld [vmem:[%s395 + $0x9a] sm:$0xff]
      %v891 = vld [vmem:[%s395 + $0xaa] sm:$0xff]
      %v892 = vld [vmem:[%s395 + $0xb2] sm:$0xff]
      %v893 = vld [vmem:[%s395 + $0xc2] sm:$0xff]
      %v894 = vld [vmem:[%s395 + $0xca] sm:$0xff]
      %v895 = vld [vmem:[%s395 + $0xda] sm:$0xff]
      %v896 = vld [vmem:[%s395 + $0xe2] sm:$0xff]
      %v897 = vld [vmem:[%s395 + $0xf2] sm:$0xff]
      %v898 = vld [vmem:[%s395 + $0xfa] sm:$0xff]
      %v899 = vld [vmem:[%s395 + $0x10a] sm:$0xff]
      %v900 = vld [vmem:[%s395 + $0x112] sm:$0xff]
      %v901 = vld [vmem:[%s395 + $0x122] sm:$0xff]
      %v902 = vld [vmem:[%s395 + $0x12a] sm:$0xff]
      %v903 = vld [vmem:[%s395 + $0x13a] sm:$0xff]
      %v904 = vld [vmem:[%s395 + $0x142] sm:$0xff]
      %v905 = vld [vmem:[%s395 + $0x152] sm:$0xff]
      %v906 = vld [vmem:[%s395 + $0x15a] sm:$0xff]
      %v907 = vld [vmem:[%s395 + $0x16a] sm:$0xff]
      %v908 = vld [vmem:[%s395 + $0x172] sm:$0xff]
      %v909 = vmul.f32 %v877, 0.1875
      %v910 = vmul.f32 %v878, 0.1875
      %v911 = vmul.f32 %v879, 0.1875
      %v912 = vmul.f32 %v880, 0.1875
      %v913 = vmul.f32 %v881, 0.1875
      %v914 = vmul.f32 %v882, 0.1875
      %v915 = vmul.f32 %v883, 0.1875
      %v916 = vmul.f32 %v884, 0.1875
      %v917 = vmul.f32 %v885, 0.1875
      %v918 = vmul.f32 %v886, 0.1875
      %v919 = vmul.f32 %v887, 0.1875
      %v920 = vmul.f32 %v888, 0.1875
      %v921 = vmul.f32 %v889, 0.1875
      %v922 = vmul.f32 %v890, 0.1875
      %v923 = vmul.f32 %v891, 0.1875
      %v924 = vmul.f32 %v892, 0.1875
      %v925 = vmul.f32 %v893, 0.1875
      %v926 = vmul.f32 %v894, 0.1875
      %v927 = vmul.f32 %v895, 0.1875
      %v928 = vmul.f32 %v896, 0.1875
      %v929 = vmul.f32 %v897, 0.1875
      %v930 = vmul.f32 %v898, 0.1875
      %v931 = vmul.f32 %v899, 0.1875
      %v932 = vmul.f32 %v900, 0.1875
      %v933 = vmul.f32 %v901, 0.1875
      %v934 = vmul.f32 %v902, 0.1875
      %v935 = vmul.f32 %v903, 0.1875
      %v936 = vmul.f32 %v904, 0.1875
      %v937 = vmul.f32 %v905, 0.1875
      %v938 = vmul.f32 %v906, 0.1875
      %v939 = vmul.f32 %v907, 0.1875
      %v940 = vmul.f32 %v908, 0.1875
      %v941 = vadd.f32 %v845, %v909
      %v942 = vadd.f32 %v846, %v910
      %v943 = vadd.f32 %v847, %v911
      %v944 = vadd.f32 %v848, %v912
      %v945 = vadd.f32 %v849, %v913
      %v946 = vadd.f32 %v850, %v914
      %v947 = vadd.f32 %v851, %v915
      %v948 = vadd.f32 %v852, %v916
      %v949 = vadd.f32 %v853, %v917
      %v950 = vadd.f32 %v854, %v918
      %v951 = vadd.f32 %v855, %v919
      %v952 = vadd.f32 %v856, %v920
      %v953 = vadd.f32 %v857, %v921
      %v954 = vadd.f32 %v858, %v922
      %v955 = vadd.f32 %v859, %v923
      %v956 = vadd.f32 %v860, %v924
      %v957 = vadd.f32 %v861, %v925
      %v958 = vadd.f32 %v862, %v926
      %v959 = vadd.f32 %v863, %v927
      %v960 = vadd.f32 %v864, %v928
      %v961 = vadd.f32 %v865, %v929
      %v962 = vadd.f32 %v866, %v930
      %v963 = vadd.f32 %v867, %v931
      %v964 = vadd.f32 %v868, %v932
      %v965 = vadd.f32 %v869, %v933
      %v966 = vadd.f32 %v870, %v934
      %v967 = vadd.f32 %v871, %v935
      %v968 = vadd.f32 %v872, %v936
      %v969 = vadd.f32 %v873, %v937
      %v970 = vadd.f32 %v874, %v938
      %v971 = vadd.f32 %v875, %v939
      %v972 = vadd.f32 %v876, %v940
      %973 = vst.msk [vmem:[%s224] sm:$0xff] %vm588, %v941
      %974 = vst.msk [vmem:[%s224 + $0x8] sm:$0xff] %vm588, %v942
      %975 = vst.msk [vmem:[%s224 + $0x10] sm:$0xff] %vm588, %v943
      %976 = vst.msk [vmem:[%s224 + $0x18] sm:$0xff] %vm588, %v944
      %977 = vst.msk [vmem:[%s224 + $0x20] sm:$0xff] %vm588, %v945
      %978 = vst.msk [vmem:[%s224 + $0x28] sm:$0xff] %vm588, %v946
      %979 = vst.msk [vmem:[%s224 + $0x30] sm:$0xff] %vm588, %v947
      %980 = vst.msk [vmem:[%s224 + $0x38] sm:$0xff] %vm588, %v948
      %981 = vst.msk [vmem:[%s224 + $0x40] sm:$0xff] %vm588, %v949
      %982 = vst.msk [vmem:[%s224 + $0x48] sm:$0xff] %vm588, %v950
      %983 = vst.msk [vmem:[%s224 + $0x50] sm:$0xff] %vm588, %v951
      %984 = vst.msk [vmem:[%s224 + $0x58] sm:$0xff] %vm588, %v952
      %985 = vst.msk [vmem:[%s224 + $0x60] sm:$0xff] %vm588, %v953
      %986 = vst.msk [vmem:[%s224 + $0x68] sm:$0xff] %vm588, %v954
      %987 = vst.msk [vmem:[%s224 + $0x70] sm:$0xff] %vm588, %v955
      %988 = vst.msk [vmem:[%s224 + $0x78] sm:$0xff] %vm588, %v956
      %989 = vst.msk [vmem:[%s224 + $0x80] sm:$0xff] %vm588, %v957
      %990 = vst.msk [vmem:[%s224 + $0x88] sm:$0xff] %vm588, %v958
      %991 = vst.msk [vmem:[%s224 + $0x90] sm:$0xff] %vm588, %v959
      %992 = vst.msk [vmem:[%s224 + $0x98] sm:$0xff] %vm588, %v960
      %993 = vst.msk [vmem:[%s224 + $0xa0] sm:$0xff] %vm588, %v961
      %994 = vst.msk [vmem:[%s224 + $0xa8] sm:$0xff] %vm588, %v962
      %995 = vst.msk [vmem:[%s224 + $0xb0] sm:$0xff] %vm588, %v963
      %996 = vst.msk [vmem:[%s224 + $0xb8] sm:$0xff] %vm588, %v964
      %997 = vst.msk [vmem:[%s224 + $0xc0] sm:$0xff] %vm588, %v965
      %998 = vst.msk [vmem:[%s224 + $0xc8] sm:$0xff] %vm588, %v966
      %999 = vst.msk [vmem:[%s224 + $0xd0] sm:$0xff] %vm588, %v967
      %1000 = vst.msk [vmem:[%s224 + $0xd8] sm:$0xff] %vm588, %v968
      %1001 = vst.msk [vmem:[%s224 + $0xe0] sm:$0xff] %vm588, %v969
      %1002 = vst.msk [vmem:[%s224 + $0xe8] sm:$0xff] %vm588, %v970
      %1003 = vst.msk [vmem:[%s224 + $0xf0] sm:$0xff] %vm588, %v971
      %1004 = vst.msk [vmem:[%s224 + $0xf8] sm:$0xff] %vm588, %v972
      %v1005 = vld [vmem:[%s395] sm:$0xff]
      %v1006 = vld [vmem:[%s395 + $0x8] sm:$0xff]
      %v1007 = vld [vmem:[%s395 + $0x18] sm:$0xff]
      %v1008 = vld [vmem:[%s395 + $0x20] sm:$0xff]
      %v1009 = vld [vmem:[%s395 + $0x30] sm:$0xff]
      %v1010 = vld [vmem:[%s395 + $0x38] sm:$0xff]
      %v1011 = vld [vmem:[%s395 + $0x48] sm:$0xff]
      %v1012 = vld [vmem:[%s395 + $0x50] sm:$0xff]
      %v1013 = vld [vmem:[%s395 + $0x60] sm:$0xff]
      %v1014 = vld [vmem:[%s395 + $0x68] sm:$0xff]
      %v1015 = vld [vmem:[%s395 + $0x78] sm:$0xff]
      %v1016 = vld [vmem:[%s395 + $0x80] sm:$0xff]
      %v1017 = vld [vmem:[%s395 + $0x90] sm:$0xff]
      %v1018 = vld [vmem:[%s395 + $0x98] sm:$0xff]
      %v1019 = vld [vmem:[%s395 + $0xa8] sm:$0xff]
      %v1020 = vld [vmem:[%s395 + $0xb0] sm:$0xff]
      %v1021 = vld [vmem:[%s395 + $0xc0] sm:$0xff]
      %v1022 = vld [vmem:[%s395 + $0xc8] sm:$0xff]
      %v1023 = vld [vmem:[%s395 + $0xd8] sm:$0xff]
      %v1024 = vld [vmem:[%s395 + $0xe0] sm:$0xff]
      %v1025 = vld [vmem:[%s395 + $0xf0] sm:$0xff]
      %v1026 = vld [vmem:[%s395 + $0xf8] sm:$0xff]
      %v1027 = vld [vmem:[%s395 + $0x108] sm:$0xff]
      %v1028 = vld [vmem:[%s395 + $0x110] sm:$0xff]
      %v1029 = vld [vmem:[%s395 + $0x120] sm:$0xff]
      %v1030 = vld [vmem:[%s395 + $0x128] sm:$0xff]
      %v1031 = vld [vmem:[%s395 + $0x138] sm:$0xff]
      %v1032 = vld [vmem:[%s395 + $0x140] sm:$0xff]
      %v1033 = vld [vmem:[%s395 + $0x150] sm:$0xff]
      %v1034 = vld [vmem:[%s395 + $0x158] sm:$0xff]
      %v1035 = vld [vmem:[%s395 + $0x168] sm:$0xff]
      %v1036 = vld [vmem:[%s395 + $0x170] sm:$0xff]
      %v1037 = vmul.f32 %v1005, 0.1875
      %v1038 = vmul.f32 %v1006, 0.1875
      %v1039 = vmul.f32 %v1007, 0.1875
      %v1040 = vmul.f32 %v1008, 0.1875
      %v1041 = vmul.f32 %v1009, 0.1875
      %v1042 = vmul.f32 %v1010, 0.1875
      %v1043 = vmul.f32 %v1011, 0.1875
      %v1044 = vmul.f32 %v1012, 0.1875
      %v1045 = vmul.f32 %v1013, 0.1875
      %v1046 = vmul.f32 %v1014, 0.1875
      %v1047 = vmul.f32 %v1015, 0.1875
      %v1048 = vmul.f32 %v1016, 0.1875
      %v1049 = vmul.f32 %v1017, 0.1875
      %v1050 = vmul.f32 %v1018, 0.1875
      %v1051 = vmul.f32 %v1019, 0.1875
      %v1052 = vmul.f32 %v1020, 0.1875
      %v1053 = vmul.f32 %v1021, 0.1875
      %v1054 = vmul.f32 %v1022, 0.1875
      %v1055 = vmul.f32 %v1023, 0.1875
      %v1056 = vmul.f32 %v1024, 0.1875
      %v1057 = vmul.f32 %v1025, 0.1875
      %v1058 = vmul.f32 %v1026, 0.1875
      %v1059 = vmul.f32 %v1027, 0.1875
      %v1060 = vmul.f32 %v1028, 0.1875
      %v1061 = vmul.f32 %v1029, 0.1875
      %v1062 = vmul.f32 %v1030, 0.1875
      %v1063 = vmul.f32 %v1031, 0.1875
      %v1064 = vmul.f32 %v1032, 0.1875
      %v1065 = vmul.f32 %v1033, 0.1875
      %v1066 = vmul.f32 %v1034, 0.1875
      %v1067 = vmul.f32 %v1035, 0.1875
      %v1068 = vmul.f32 %v1036, 0.1875
      %v1069 = vld [vmem:[%s395 + $0x1] sm:$0xff]
      %v1070 = vld [vmem:[%s395 + $0x9] sm:$0xff]
      %v1071 = vld [vmem:[%s395 + $0x19] sm:$0xff]
      %v1072 = vld [vmem:[%s395 + $0x21] sm:$0xff]
      %v1073 = vld [vmem:[%s395 + $0x31] sm:$0xff]
      %v1074 = vld [vmem:[%s395 + $0x39] sm:$0xff]
      %v1075 = vld [vmem:[%s395 + $0x49] sm:$0xff]
      %v1076 = vld [vmem:[%s395 + $0x51] sm:$0xff]
      %v1077 = vld [vmem:[%s395 + $0x61] sm:$0xff]
      %v1078 = vld [vmem:[%s395 + $0x69] sm:$0xff]
      %v1079 = vld [vmem:[%s395 + $0x79] sm:$0xff]
      %v1080 = vld [vmem:[%s395 + $0x81] sm:$0xff]
      %v1081 = vld [vmem:[%s395 + $0x91] sm:$0xff]
      %v1082 = vld [vmem:[%s395 + $0x99] sm:$0xff]
      %v1083 = vld [vmem:[%s395 + $0xa9] sm:$0xff]
      %v1084 = vld [vmem:[%s395 + $0xb1] sm:$0xff]
      %v1085 = vld [vmem:[%s395 + $0xc1] sm:$0xff]
      %v1086 = vld [vmem:[%s395 + $0xc9] sm:$0xff]
      %v1087 = vld [vmem:[%s395 + $0xd9] sm:$0xff]
      %v1088 = vld [vmem:[%s395 + $0xe1] sm:$0xff]
      %v1089 = vld [vmem:[%s395 + $0xf1] sm:$0xff]
      %v1090 = vld [vmem:[%s395 + $0xf9] sm:$0xff]
      %v1091 = vld [vmem:[%s395 + $0x109] sm:$0xff]
      %v1092 = vld [vmem:[%s395 + $0x111] sm:$0xff]
      %v1093 = vld [vmem:[%s395 + $0x121] sm:$0xff]
      %v1094 = vld [vmem:[%s395 + $0x129] sm:$0xff]
      %v1095 = vld [vmem:[%s395 + $0x139] sm:$0xff]
      %v1096 = vld [vmem:[%s395 + $0x141] sm:$0xff]
      %v1097 = vld [vmem:[%s395 + $0x151] sm:$0xff]
      %v1098 = vld [vmem:[%s395 + $0x159] sm:$0xff]
      %v1099 = vld [vmem:[%s395 + $0x169] sm:$0xff]
      %v1100 = vld [vmem:[%s395 + $0x171] sm:$0xff]
      %v1101 = vmul.f32 %v1069, 0.5625
      %v1102 = vmul.f32 %v1070, 0.5625
      %v1103 = vmul.f32 %v1071, 0.5625
      %v1104 = vmul.f32 %v1072, 0.5625
      %v1105 = vmul.f32 %v1073, 0.5625
      %v1106 = vmul.f32 %v1074, 0.5625
      %v1107 = vmul.f32 %v1075, 0.5625
      %v1108 = vmul.f32 %v1076, 0.5625
      %v1109 = vmul.f32 %v1077, 0.5625
      %v1110 = vmul.f32 %v1078, 0.5625
      %v1111 = vmul.f32 %v1079, 0.5625
      %v1112 = vmul.f32 %v1080, 0.5625
      %v1113 = vmul.f32 %v1081, 0.5625
      %v1114 = vmul.f32 %v1082, 0.5625
      %v1115 = vmul.f32 %v1083, 0.5625
      %v1116 = vmul.f32 %v1084, 0.5625
      %v1117 = vmul.f32 %v1085, 0.5625
      %v1118 = vmul.f32 %v1086, 0.5625
      %v1119 = vmul.f32 %v1087, 0.5625
      %v1120 = vmul.f32 %v1088, 0.5625
      %v1121 = vmul.f32 %v1089, 0.5625
      %v1122 = vmul.f32 %v1090, 0.5625
      %v1123 = vmul.f32 %v1091, 0.5625
      %v1124 = vmul.f32 %v1092, 0.5625
      %v1125 = vmul.f32 %v1093, 0.5625
      %v1126 = vmul.f32 %v1094, 0.5625
      %v1127 = vmul.f32 %v1095, 0.5625
      %v1128 = vmul.f32 %v1096, 0.5625
      %v1129 = vmul.f32 %v1097, 0.5625
      %v1130 = vmul.f32 %v1098, 0.5625
      %v1131 = vmul.f32 %v1099, 0.5625
      %v1132 = vmul.f32 %v1100, 0.5625
      %v1133 = vadd.f32 %v1037, %v1101
      %v1134 = vadd.f32 %v1038, %v1102
      %v1135 = vadd.f32 %v1039, %v1103
      %v1136 = vadd.f32 %v1040, %v1104
      %v1137 = vadd.f32 %v1041, %v1105
      %v1138 = vadd.f32 %v1042, %v1106
      %v1139 = vadd.f32 %v1043, %v1107
      %v1140 = vadd.f32 %v1044, %v1108
      %v1141 = vadd.f32 %v1045, %v1109
      %v1142 = vadd.f32 %v1046, %v1110
      %v1143 = vadd.f32 %v1047, %v1111
      %v1144 = vadd.f32 %v1048, %v1112
      %v1145 = vadd.f32 %v1049, %v1113
      %v1146 = vadd.f32 %v1050, %v1114
      %v1147 = vadd.f32 %v1051, %v1115
      %v1148 = vadd.f32 %v1052, %v1116
      %v1149 = vadd.f32 %v1053, %v1117
      %v1150 = vadd.f32 %v1054, %v1118
      %v1151 = vadd.f32 %v1055, %v1119
      %v1152 = vadd.f32 %v1056, %v1120
      %v1153 = vadd.f32 %v1057, %v1121
      %v1154 = vadd.f32 %v1058, %v1122
      %v1155 = vadd.f32 %v1059, %v1123
      %v1156 = vadd.f32 %v1060, %v1124
      %v1157 = vadd.f32 %v1061, %v1125
      %v1158 = vadd.f32 %v1062, %v1126
      %v1159 = vadd.f32 %v1063, %v1127
      %v1160 = vadd.f32 %v1064, %v1128
      %v1161 = vadd.f32 %v1065, %v1129
      %v1162 = vadd.f32 %v1066, %v1130
      %v1163 = vadd.f32 %v1067, %v1131
      %v1164 = vadd.f32 %v1068, %v1132
      %s1165 = scalar_lea.vmem %s214, 48
      %v1166 = vld [vmem:[%s1165] sm:$0xff]
      %v1167 = vld [vmem:[%s1165 + $0x8] sm:$0xff]
      %v1168 = vld [vmem:[%s1165 + $0x18] sm:$0xff]
      %v1169 = vld [vmem:[%s1165 + $0x20] sm:$0xff]
      %v1170 = vld [vmem:[%s1165 + $0x30] sm:$0xff]
      %v1171 = vld [vmem:[%s1165 + $0x38] sm:$0xff]
      %v1172 = vld [vmem:[%s1165 + $0x48] sm:$0xff]
      %v1173 = vld [vmem:[%s1165 + $0x50] sm:$0xff]
      %v1174 = vld [vmem:[%s1165 + $0x60] sm:$0xff]
      %v1175 = vld [vmem:[%s1165 + $0x68] sm:$0xff]
      %v1176 = vld [vmem:[%s1165 + $0x78] sm:$0xff]
      %v1177 = vld [vmem:[%s1165 + $0x80] sm:$0xff]
      %v1178 = vld [vmem:[%s1165 + $0x90] sm:$0xff]
      %v1179 = vld [vmem:[%s1165 + $0x98] sm:$0xff]
      %v1180 = vld [vmem:[%s1165 + $0xa8] sm:$0xff]
      %v1181 = vld [vmem:[%s1165 + $0xb0] sm:$0xff]
      %v1182 = vld [vmem:[%s1165 + $0xc0] sm:$0xff]
      %v1183 = vld [vmem:[%s1165 + $0xc8] sm:$0xff]
      %v1184 = vld [vmem:[%s1165 + $0xd8] sm:$0xff]
      %v1185 = vld [vmem:[%s1165 + $0xe0] sm:$0xff]
      %v1186 = vld [vmem:[%s1165 + $0xf0] sm:$0xff]
      %v1187 = vld [vmem:[%s1165 + $0xf8] sm:$0xff]
      %v1188 = vld [vmem:[%s1165 + $0x108] sm:$0xff]
      %v1189 = vld [vmem:[%s1165 + $0x110] sm:$0xff]
      %v1190 = vld [vmem:[%s1165 + $0x120] sm:$0xff]
      %v1191 = vld [vmem:[%s1165 + $0x128] sm:$0xff]
      %v1192 = vld [vmem:[%s1165 + $0x138] sm:$0xff]
      %v1193 = vld [vmem:[%s1165 + $0x140] sm:$0xff]
      %v1194 = vld [vmem:[%s1165 + $0x150] sm:$0xff]
      %v1195 = vld [vmem:[%s1165 + $0x158] sm:$0xff]
      %v1196 = vld [vmem:[%s1165 + $0x168] sm:$0xff]
      %v1197 = vld [vmem:[%s1165 + $0x170] sm:$0xff]
      %v1198 = vmul.f32 %v1166, 0.0625
      %v1199 = vmul.f32 %v1167, 0.0625
      %v1200 = vmul.f32 %v1168, 0.0625
      %v1201 = vmul.f32 %v1169, 0.0625
      %v1202 = vmul.f32 %v1170, 0.0625
      %v1203 = vmul.f32 %v1171, 0.0625
      %v1204 = vmul.f32 %v1172, 0.0625
      %v1205 = vmul.f32 %v1173, 0.0625
      %v1206 = vmul.f32 %v1174, 0.0625
      %v1207 = vmul.f32 %v1175, 0.0625
      %v1208 = vmul.f32 %v1176, 0.0625
      %v1209 = vmul.f32 %v1177, 0.0625
      %v1210 = vmul.f32 %v1178, 0.0625
      %v1211 = vmul.f32 %v1179, 0.0625
      %v1212 = vmul.f32 %v1180, 0.0625
      %v1213 = vmul.f32 %v1181, 0.0625
      %v1214 = vmul.f32 %v1182, 0.0625
      %v1215 = vmul.f32 %v1183, 0.0625
      %v1216 = vmul.f32 %v1184, 0.0625
      %v1217 = vmul.f32 %v1185, 0.0625
      %v1218 = vmul.f32 %v1186, 0.0625
      %v1219 = vmul.f32 %v1187, 0.0625
      %v1220 = vmul.f32 %v1188, 0.0625
      %v1221 = vmul.f32 %v1189, 0.0625
      %v1222 = vmul.f32 %v1190, 0.0625
      %v1223 = vmul.f32 %v1191, 0.0625
      %v1224 = vmul.f32 %v1192, 0.0625
      %v1225 = vmul.f32 %v1193, 0.0625
      %v1226 = vmul.f32 %v1194, 0.0625
      %v1227 = vmul.f32 %v1195, 0.0625
      %v1228 = vmul.f32 %v1196, 0.0625
      %v1229 = vmul.f32 %v1197, 0.0625
      %v1230 = vadd.f32 %v1133, %v1198
      %v1231 = vadd.f32 %v1134, %v1199
      %v1232 = vadd.f32 %v1135, %v1200
      %v1233 = vadd.f32 %v1136, %v1201
      %v1234 = vadd.f32 %v1137, %v1202
      %v1235 = vadd.f32 %v1138, %v1203
      %v1236 = vadd.f32 %v1139, %v1204
      %v1237 = vadd.f32 %v1140, %v1205
      %v1238 = vadd.f32 %v1141, %v1206
      %v1239 = vadd.f32 %v1142, %v1207
      %v1240 = vadd.f32 %v1143, %v1208
      %v1241 = vadd.f32 %v1144, %v1209
      %v1242 = vadd.f32 %v1145, %v1210
      %v1243 = vadd.f32 %v1146, %v1211
      %v1244 = vadd.f32 %v1147, %v1212
      %v1245 = vadd.f32 %v1148, %v1213
      %v1246 = vadd.f32 %v1149, %v1214
      %v1247 = vadd.f32 %v1150, %v1215
      %v1248 = vadd.f32 %v1151, %v1216
      %v1249 = vadd.f32 %v1152, %v1217
      %v1250 = vadd.f32 %v1153, %v1218
      %v1251 = vadd.f32 %v1154, %v1219
      %v1252 = vadd.f32 %v1155, %v1220
      %v1253 = vadd.f32 %v1156, %v1221
      %v1254 = vadd.f32 %v1157, %v1222
      %v1255 = vadd.f32 %v1158, %v1223
      %v1256 = vadd.f32 %v1159, %v1224
      %v1257 = vadd.f32 %v1160, %v1225
      %v1258 = vadd.f32 %v1161, %v1226
      %v1259 = vadd.f32 %v1162, %v1227
      %v1260 = vadd.f32 %v1163, %v1228
      %v1261 = vadd.f32 %v1164, %v1229
      %v1262 = vld [vmem:[%s1165 + $0x1] sm:$0xff]
      %v1263 = vld [vmem:[%s1165 + $0x9] sm:$0xff]
      %v1264 = vld [vmem:[%s1165 + $0x19] sm:$0xff]
      %v1265 = vld [vmem:[%s1165 + $0x21] sm:$0xff]
      %v1266 = vld [vmem:[%s1165 + $0x31] sm:$0xff]
      %v1267 = vld [vmem:[%s1165 + $0x39] sm:$0xff]
      %v1268 = vld [vmem:[%s1165 + $0x49] sm:$0xff]
      %v1269 = vld [vmem:[%s1165 + $0x51] sm:$0xff]
      %v1270 = vld [vmem:[%s1165 + $0x61] sm:$0xff]
      %v1271 = vld [vmem:[%s1165 + $0x69] sm:$0xff]
      %v1272 = vld [vmem:[%s1165 + $0x79] sm:$0xff]
      %v1273 = vld [vmem:[%s1165 + $0x81] sm:$0xff]
      %v1274 = vld [vmem:[%s1165 + $0x91] sm:$0xff]
      %v1275 = vld [vmem:[%s1165 + $0x99] sm:$0xff]
      %v1276 = vld [vmem:[%s1165 + $0xa9] sm:$0xff]
      %v1277 = vld [vmem:[%s1165 + $0xb1] sm:$0xff]
      %v1278 = vld [vmem:[%s1165 + $0xc1] sm:$0xff]
      %v1279 = vld [vmem:[%s1165 + $0xc9] sm:$0xff]
      %v1280 = vld [vmem:[%s1165 + $0xd9] sm:$0xff]
      %v1281 = vld [vmem:[%s1165 + $0xe1] sm:$0xff]
      %v1282 = vld [vmem:[%s1165 + $0xf1] sm:$0xff]
      %v1283 = vld [vmem:[%s1165 + $0xf9] sm:$0xff]
      %v1284 = vld [vmem:[%s1165 + $0x109] sm:$0xff]
      %v1285 = vld [vmem:[%s1165 + $0x111] sm:$0xff]
      %v1286 = vld [vmem:[%s1165 + $0x121] sm:$0xff]
      %v1287 = vld [vmem:[%s1165 + $0x129] sm:$0xff]
      %v1288 = vld [vmem:[%s1165 + $0x139] sm:$0xff]
      %v1289 = vld [vmem:[%s1165 + $0x141] sm:$0xff]
      %v1290 = vld [vmem:[%s1165 + $0x151] sm:$0xff]
      %v1291 = vld [vmem:[%s1165 + $0x159] sm:$0xff]
      %v1292 = vld [vmem:[%s1165 + $0x169] sm:$0xff]
      %v1293 = vld [vmem:[%s1165 + $0x171] sm:$0xff]
      %v1294 = vmul.f32 %v1262, 0.1875
      %v1295 = vmul.f32 %v1263, 0.1875
      %v1296 = vmul.f32 %v1264, 0.1875
      %v1297 = vmul.f32 %v1265, 0.1875
      %v1298 = vmul.f32 %v1266, 0.1875
      %v1299 = vmul.f32 %v1267, 0.1875
      %v1300 = vmul.f32 %v1268, 0.1875
      %v1301 = vmul.f32 %v1269, 0.1875
      %v1302 = vmul.f32 %v1270, 0.1875
      %v1303 = vmul.f32 %v1271, 0.1875
      %v1304 = vmul.f32 %v1272, 0.1875
      %v1305 = vmul.f32 %v1273, 0.1875
      %v1306 = vmul.f32 %v1274, 0.1875
      %v1307 = vmul.f32 %v1275, 0.1875
      %v1308 = vmul.f32 %v1276, 0.1875
      %v1309 = vmul.f32 %v1277, 0.1875
      %v1310 = vmul.f32 %v1278, 0.1875
      %v1311 = vmul.f32 %v1279, 0.1875
      %v1312 = vmul.f32 %v1280, 0.1875
      %v1313 = vmul.f32 %v1281, 0.1875
      %v1314 = vmul.f32 %v1282, 0.1875
      %v1315 = vmul.f32 %v1283, 0.1875
      %v1316 = vmul.f32 %v1284, 0.1875
      %v1317 = vmul.f32 %v1285, 0.1875
      %v1318 = vmul.f32 %v1286, 0.1875
      %v1319 = vmul.f32 %v1287, 0.1875
      %v1320 = vmul.f32 %v1288, 0.1875
      %v1321 = vmul.f32 %v1289, 0.1875
      %v1322 = vmul.f32 %v1290, 0.1875
      %v1323 = vmul.f32 %v1291, 0.1875
      %v1324 = vmul.f32 %v1292, 0.1875
      %v1325 = vmul.f32 %v1293, 0.1875
      %v1326 = vadd.f32 %v1230, %v1294
      %v1327 = vadd.f32 %v1231, %v1295
      %v1328 = vadd.f32 %v1232, %v1296
      %v1329 = vadd.f32 %v1233, %v1297
      %v1330 = vadd.f32 %v1234, %v1298
      %v1331 = vadd.f32 %v1235, %v1299
      %v1332 = vadd.f32 %v1236, %v1300
      %v1333 = vadd.f32 %v1237, %v1301
      %v1334 = vadd.f32 %v1238, %v1302
      %v1335 = vadd.f32 %v1239, %v1303
      %v1336 = vadd.f32 %v1240, %v1304
      %v1337 = vadd.f32 %v1241, %v1305
      %v1338 = vadd.f32 %v1242, %v1306
      %v1339 = vadd.f32 %v1243, %v1307
      %v1340 = vadd.f32 %v1244, %v1308
      %v1341 = vadd.f32 %v1245, %v1309
      %v1342 = vadd.f32 %v1246, %v1310
      %v1343 = vadd.f32 %v1247, %v1311
      %v1344 = vadd.f32 %v1248, %v1312
      %v1345 = vadd.f32 %v1249, %v1313
      %v1346 = vadd.f32 %v1250, %v1314
      %v1347 = vadd.f32 %v1251, %v1315
      %v1348 = vadd.f32 %v1252, %v1316
      %v1349 = vadd.f32 %v1253, %v1317
      %v1350 = vadd.f32 %v1254, %v1318
      %v1351 = vadd.f32 %v1255, %v1319
      %v1352 = vadd.f32 %v1256, %v1320
      %v1353 = vadd.f32 %v1257, %v1321
      %v1354 = vadd.f32 %v1258, %v1322
      %v1355 = vadd.f32 %v1259, %v1323
      %v1356 = vadd.f32 %v1260, %v1324
      %v1357 = vadd.f32 %v1261, %v1325
      %1358 = vst.msk [vmem:[%s229] sm:$0xff] %vm588, %v1326
      %1359 = vst.msk [vmem:[%s229 + $0x8] sm:$0xff] %vm588, %v1327
      %1360 = vst.msk [vmem:[%s229 + $0x10] sm:$0xff] %vm588, %v1328
      %1361 = vst.msk [vmem:[%s229 + $0x18] sm:$0xff] %vm588, %v1329
      %1362 = vst.msk [vmem:[%s229 + $0x20] sm:$0xff] %vm588, %v1330
      %1363 = vst.msk [vmem:[%s229 + $0x28] sm:$0xff] %vm588, %v1331
      %1364 = vst.msk [vmem:[%s229 + $0x30] sm:$0xff] %vm588, %v1332
      %1365 = vst.msk [vmem:[%s229 + $0x38] sm:$0xff] %vm588, %v1333
      %1366 = vst.msk [vmem:[%s229 + $0x40] sm:$0xff] %vm588, %v1334
      %1367 = vst.msk [vmem:[%s229 + $0x48] sm:$0xff] %vm588, %v1335
      %1368 = vst.msk [vmem:[%s229 + $0x50] sm:$0xff] %vm588, %v1336
      %1369 = vst.msk [vmem:[%s229 + $0x58] sm:$0xff] %vm588, %v1337
      %1370 = vst.msk [vmem:[%s229 + $0x60] sm:$0xff] %vm588, %v1338
      %1371 = vst.msk [vmem:[%s229 + $0x68] sm:$0xff] %vm588, %v1339
      %1372 = vst.msk [vmem:[%s229 + $0x70] sm:$0xff] %vm588, %v1340
      %1373 = vst.msk [vmem:[%s229 + $0x78] sm:$0xff] %vm588, %v1341
      %1374 = vst.msk [vmem:[%s229 + $0x80] sm:$0xff] %vm588, %v1342
      %1375 = vst.msk [vmem:[%s229 + $0x88] sm:$0xff] %vm588, %v1343
      %1376 = vst.msk [vmem:[%s229 + $0x90] sm:$0xff] %vm588, %v1344
      %1377 = vst.msk [vmem:[%s229 + $0x98] sm:$0xff] %vm588, %v1345
      %1378 = vst.msk [vmem:[%s229 + $0xa0] sm:$0xff] %vm588, %v1346
      %1379 = vst.msk [vmem:[%s229 + $0xa8] sm:$0xff] %vm588, %v1347
      %1380 = vst.msk [vmem:[%s229 + $0xb0] sm:$0xff] %vm588, %v1348
      %1381 = vst.msk [vmem:[%s229 + $0xb8] sm:$0xff] %vm588, %v1349
      %1382 = vst.msk [vmem:[%s229 + $0xc0] sm:$0xff] %vm588, %v1350
      %1383 = vst.msk [vmem:[%s229 + $0xc8] sm:$0xff] %vm588, %v1351
      %1384 = vst.msk [vmem:[%s229 + $0xd0] sm:$0xff] %vm588, %v1352
      %1385 = vst.msk [vmem:[%s229 + $0xd8] sm:$0xff] %vm588, %v1353
      %1386 = vst.msk [vmem:[%s229 + $0xe0] sm:$0xff] %vm588, %v1354
      %1387 = vst.msk [vmem:[%s229 + $0xe8] sm:$0xff] %vm588, %v1355
      %1388 = vst.msk [vmem:[%s229 + $0xf0] sm:$0xff] %vm588, %v1356
      %1389 = vst.msk [vmem:[%s229 + $0xf8] sm:$0xff] %vm588, %v1357
      %v1390 = vld [vmem:[%s395 + $0x1] sm:$0xff]
      %v1391 = vld [vmem:[%s395 + $0x9] sm:$0xff]
      %v1392 = vld [vmem:[%s395 + $0x19] sm:$0xff]
      %v1393 = vld [vmem:[%s395 + $0x21] sm:$0xff]
      %v1394 = vld [vmem:[%s395 + $0x31] sm:$0xff]
      %v1395 = vld [vmem:[%s395 + $0x39] sm:$0xff]
      %v1396 = vld [vmem:[%s395 + $0x49] sm:$0xff]
      %v1397 = vld [vmem:[%s395 + $0x51] sm:$0xff]
      %v1398 = vld [vmem:[%s395 + $0x61] sm:$0xff]
      %v1399 = vld [vmem:[%s395 + $0x69] sm:$0xff]
      %v1400 = vld [vmem:[%s395 + $0x79] sm:$0xff]
      %v1401 = vld [vmem:[%s395 + $0x81] sm:$0xff]
      %v1402 = vld [vmem:[%s395 + $0x91] sm:$0xff]
      %v1403 = vld [vmem:[%s395 + $0x99] sm:$0xff]
      %v1404 = vld [vmem:[%s395 + $0xa9] sm:$0xff]
      %v1405 = vld [vmem:[%s395 + $0xb1] sm:$0xff]
      %v1406 = vld [vmem:[%s395 + $0xc1] sm:$0xff]
      %v1407 = vld [vmem:[%s395 + $0xc9] sm:$0xff]
      %v1408 = vld [vmem:[%s395 + $0xd9] sm:$0xff]
      %v1409 = vld [vmem:[%s395 + $0xe1] sm:$0xff]
      %v1410 = vld [vmem:[%s395 + $0xf1] sm:$0xff]
      %v1411 = vld [vmem:[%s395 + $0xf9] sm:$0xff]
      %v1412 = vld [vmem:[%s395 + $0x109] sm:$0xff]
      %v1413 = vld [vmem:[%s395 + $0x111] sm:$0xff]
      %v1414 = vld [vmem:[%s395 + $0x121] sm:$0xff]
      %v1415 = vld [vmem:[%s395 + $0x129] sm:$0xff]
      %v1416 = vld [vmem:[%s395 + $0x139] sm:$0xff]
      %v1417 = vld [vmem:[%s395 + $0x141] sm:$0xff]
      %v1418 = vld [vmem:[%s395 + $0x151] sm:$0xff]
      %v1419 = vld [vmem:[%s395 + $0x159] sm:$0xff]
      %v1420 = vld [vmem:[%s395 + $0x169] sm:$0xff]
      %v1421 = vld [vmem:[%s395 + $0x171] sm:$0xff]
      %v1422 = vmul.f32 %v1390, 0.5625
      %v1423 = vmul.f32 %v1391, 0.5625
      %v1424 = vmul.f32 %v1392, 0.5625
      %v1425 = vmul.f32 %v1393, 0.5625
      %v1426 = vmul.f32 %v1394, 0.5625
      %v1427 = vmul.f32 %v1395, 0.5625
      %v1428 = vmul.f32 %v1396, 0.5625
      %v1429 = vmul.f32 %v1397, 0.5625
      %v1430 = vmul.f32 %v1398, 0.5625
      %v1431 = vmul.f32 %v1399, 0.5625
      %v1432 = vmul.f32 %v1400, 0.5625
      %v1433 = vmul.f32 %v1401, 0.5625
      %v1434 = vmul.f32 %v1402, 0.5625
      %v1435 = vmul.f32 %v1403, 0.5625
      %v1436 = vmul.f32 %v1404, 0.5625
      %v1437 = vmul.f32 %v1405, 0.5625
      %v1438 = vmul.f32 %v1406, 0.5625
      %v1439 = vmul.f32 %v1407, 0.5625
      %v1440 = vmul.f32 %v1408, 0.5625
      %v1441 = vmul.f32 %v1409, 0.5625
      %v1442 = vmul.f32 %v1410, 0.5625
      %v1443 = vmul.f32 %v1411, 0.5625
      %v1444 = vmul.f32 %v1412, 0.5625
      %v1445 = vmul.f32 %v1413, 0.5625
      %v1446 = vmul.f32 %v1414, 0.5625
      %v1447 = vmul.f32 %v1415, 0.5625
      %v1448 = vmul.f32 %v1416, 0.5625
      %v1449 = vmul.f32 %v1417, 0.5625
      %v1450 = vmul.f32 %v1418, 0.5625
      %v1451 = vmul.f32 %v1419, 0.5625
      %v1452 = vmul.f32 %v1420, 0.5625
      %v1453 = vmul.f32 %v1421, 0.5625
      %v1454 = vld [vmem:[%s395 + $0x2] sm:$0xff]
      %v1455 = vld [vmem:[%s395 + $0xa] sm:$0xff]
      %v1456 = vld [vmem:[%s395 + $0x1a] sm:$0xff]
      %v1457 = vld [vmem:[%s395 + $0x22] sm:$0xff]
      %v1458 = vld [vmem:[%s395 + $0x32] sm:$0xff]
      %v1459 = vld [vmem:[%s395 + $0x3a] sm:$0xff]
      %v1460 = vld [vmem:[%s395 + $0x4a] sm:$0xff]
      %v1461 = vld [vmem:[%s395 + $0x52] sm:$0xff]
      %v1462 = vld [vmem:[%s395 + $0x62] sm:$0xff]
      %v1463 = vld [vmem:[%s395 + $0x6a] sm:$0xff]
      %v1464 = vld [vmem:[%s395 + $0x7a] sm:$0xff]
      %v1465 = vld [vmem:[%s395 + $0x82] sm:$0xff]
      %v1466 = vld [vmem:[%s395 + $0x92] sm:$0xff]
      %v1467 = vld [vmem:[%s395 + $0x9a] sm:$0xff]
      %v1468 = vld [vmem:[%s395 + $0xaa] sm:$0xff]
      %v1469 = vld [vmem:[%s395 + $0xb2] sm:$0xff]
      %v1470 = vld [vmem:[%s395 + $0xc2] sm:$0xff]
      %v1471 = vld [vmem:[%s395 + $0xca] sm:$0xff]
      %v1472 = vld [vmem:[%s395 + $0xda] sm:$0xff]
      %v1473 = vld [vmem:[%s395 + $0xe2] sm:$0xff]
      %v1474 = vld [vmem:[%s395 + $0xf2] sm:$0xff]
      %v1475 = vld [vmem:[%s395 + $0xfa] sm:$0xff]
      %v1476 = vld [vmem:[%s395 + $0x10a] sm:$0xff]
      %v1477 = vld [vmem:[%s395 + $0x112] sm:$0xff]
      %v1478 = vld [vmem:[%s395 + $0x122] sm:$0xff]
      %v1479 = vld [vmem:[%s395 + $0x12a] sm:$0xff]
      %v1480 = vld [vmem:[%s395 + $0x13a] sm:$0xff]
      %v1481 = vld [vmem:[%s395 + $0x142] sm:$0xff]
      %v1482 = vld [vmem:[%s395 + $0x152] sm:$0xff]
      %v1483 = vld [vmem:[%s395 + $0x15a] sm:$0xff]
      %v1484 = vld [vmem:[%s395 + $0x16a] sm:$0xff]
      %v1485 = vld [vmem:[%s395 + $0x172] sm:$0xff]
      %v1486 = vmul.f32 %v1454, 0.1875
      %v1487 = vmul.f32 %v1455, 0.1875
      %v1488 = vmul.f32 %v1456, 0.1875
      %v1489 = vmul.f32 %v1457, 0.1875
      %v1490 = vmul.f32 %v1458, 0.1875
      %v1491 = vmul.f32 %v1459, 0.1875
      %v1492 = vmul.f32 %v1460, 0.1875
      %v1493 = vmul.f32 %v1461, 0.1875
      %v1494 = vmul.f32 %v1462, 0.1875
      %v1495 = vmul.f32 %v1463, 0.1875
      %v1496 = vmul.f32 %v1464, 0.1875
      %v1497 = vmul.f32 %v1465, 0.1875
      %v1498 = vmul.f32 %v1466, 0.1875
      %v1499 = vmul.f32 %v1467, 0.1875
      %v1500 = vmul.f32 %v1468, 0.1875
      %v1501 = vmul.f32 %v1469, 0.1875
      %v1502 = vmul.f32 %v1470, 0.1875
      %v1503 = vmul.f32 %v1471, 0.1875
      %v1504 = vmul.f32 %v1472, 0.1875
      %v1505 = vmul.f32 %v1473, 0.1875
      %v1506 = vmul.f32 %v1474, 0.1875
      %v1507 = vmul.f32 %v1475, 0.1875
      %v1508 = vmul.f32 %v1476, 0.1875
      %v1509 = vmul.f32 %v1477, 0.1875
      %v1510 = vmul.f32 %v1478, 0.1875
      %v1511 = vmul.f32 %v1479, 0.1875
      %v1512 = vmul.f32 %v1480, 0.1875
      %v1513 = vmul.f32 %v1481, 0.1875
      %v1514 = vmul.f32 %v1482, 0.1875
      %v1515 = vmul.f32 %v1483, 0.1875
      %v1516 = vmul.f32 %v1484, 0.1875
      %v1517 = vmul.f32 %v1485, 0.1875
      %v1518 = vadd.f32 %v1422, %v1486
      %v1519 = vadd.f32 %v1423, %v1487
      %v1520 = vadd.f32 %v1424, %v1488
      %v1521 = vadd.f32 %v1425, %v1489
      %v1522 = vadd.f32 %v1426, %v1490
      %v1523 = vadd.f32 %v1427, %v1491
      %v1524 = vadd.f32 %v1428, %v1492
      %v1525 = vadd.f32 %v1429, %v1493
      %v1526 = vadd.f32 %v1430, %v1494
      %v1527 = vadd.f32 %v1431, %v1495
      %v1528 = vadd.f32 %v1432, %v1496
      %v1529 = vadd.f32 %v1433, %v1497
      %v1530 = vadd.f32 %v1434, %v1498
      %v1531 = vadd.f32 %v1435, %v1499
      %v1532 = vadd.f32 %v1436, %v1500
      %v1533 = vadd.f32 %v1437, %v1501
      %v1534 = vadd.f32 %v1438, %v1502
      %v1535 = vadd.f32 %v1439, %v1503
      %v1536 = vadd.f32 %v1440, %v1504
      %v1537 = vadd.f32 %v1441, %v1505
      %v1538 = vadd.f32 %v1442, %v1506
      %v1539 = vadd.f32 %v1443, %v1507
      %v1540 = vadd.f32 %v1444, %v1508
      %v1541 = vadd.f32 %v1445, %v1509
      %v1542 = vadd.f32 %v1446, %v1510
      %v1543 = vadd.f32 %v1447, %v1511
      %v1544 = vadd.f32 %v1448, %v1512
      %v1545 = vadd.f32 %v1449, %v1513
      %v1546 = vadd.f32 %v1450, %v1514
      %v1547 = vadd.f32 %v1451, %v1515
      %v1548 = vadd.f32 %v1452, %v1516
      %v1549 = vadd.f32 %v1453, %v1517
      %v1550 = vld [vmem:[%s1165 + $0x1] sm:$0xff]
      %v1551 = vld [vmem:[%s1165 + $0x9] sm:$0xff]
      %v1552 = vld [vmem:[%s1165 + $0x19] sm:$0xff]
      %v1553 = vld [vmem:[%s1165 + $0x21] sm:$0xff]
      %v1554 = vld [vmem:[%s1165 + $0x31] sm:$0xff]
      %v1555 = vld [vmem:[%s1165 + $0x39] sm:$0xff]
      %v1556 = vld [vmem:[%s1165 + $0x49] sm:$0xff]
      %v1557 = vld [vmem:[%s1165 + $0x51] sm:$0xff]
      %v1558 = vld [vmem:[%s1165 + $0x61] sm:$0xff]
      %v1559 = vld [vmem:[%s1165 + $0x69] sm:$0xff]
      %v1560 = vld [vmem:[%s1165 + $0x79] sm:$0xff]
      %v1561 = vld [vmem:[%s1165 + $0x81] sm:$0xff]
      %v1562 = vld [vmem:[%s1165 + $0x91] sm:$0xff]
      %v1563 = vld [vmem:[%s1165 + $0x99] sm:$0xff]
      %v1564 = vld [vmem:[%s1165 + $0xa9] sm:$0xff]
      %v1565 = vld [vmem:[%s1165 + $0xb1] sm:$0xff]
      %v1566 = vld [vmem:[%s1165 + $0xc1] sm:$0xff]
      %v1567 = vld [vmem:[%s1165 + $0xc9] sm:$0xff]
      %v1568 = vld [vmem:[%s1165 + $0xd9] sm:$0xff]
      %v1569 = vld [vmem:[%s1165 + $0xe1] sm:$0xff]
      %v1570 = vld [vmem:[%s1165 + $0xf1] sm:$0xff]
      %v1571 = vld [vmem:[%s1165 + $0xf9] sm:$0xff]
      %v1572 = vld [vmem:[%s1165 + $0x109] sm:$0xff]
      %v1573 = vld [vmem:[%s1165 + $0x111] sm:$0xff]
      %v1574 = vld [vmem:[%s1165 + $0x121] sm:$0xff]
      %v1575 = vld [vmem:[%s1165 + $0x129] sm:$0xff]
      %v1576 = vld [vmem:[%s1165 + $0x139] sm:$0xff]
      %v1577 = vld [vmem:[%s1165 + $0x141] sm:$0xff]
      %v1578 = vld [vmem:[%s1165 + $0x151] sm:$0xff]
      %v1579 = vld [vmem:[%s1165 + $0x159] sm:$0xff]
      %v1580 = vld [vmem:[%s1165 + $0x169] sm:$0xff]
      %v1581 = vld [vmem:[%s1165 + $0x171] sm:$0xff]
      %v1582 = vmul.f32 %v1550, 0.1875
      %v1583 = vmul.f32 %v1551, 0.1875
      %v1584 = vmul.f32 %v1552, 0.1875
      %v1585 = vmul.f32 %v1553, 0.1875
      %v1586 = vmul.f32 %v1554, 0.1875
      %v1587 = vmul.f32 %v1555, 0.1875
      %v1588 = vmul.f32 %v1556, 0.1875
      %v1589 = vmul.f32 %v1557, 0.1875
      %v1590 = vmul.f32 %v1558, 0.1875
      %v1591 = vmul.f32 %v1559, 0.1875
      %v1592 = vmul.f32 %v1560, 0.1875
      %v1593 = vmul.f32 %v1561, 0.1875
      %v1594 = vmul.f32 %v1562, 0.1875
      %v1595 = vmul.f32 %v1563, 0.1875
      %v1596 = vmul.f32 %v1564, 0.1875
      %v1597 = vmul.f32 %v1565, 0.1875
      %v1598 = vmul.f32 %v1566, 0.1875
      %v1599 = vmul.f32 %v1567, 0.1875
      %v1600 = vmul.f32 %v1568, 0.1875
      %v1601 = vmul.f32 %v1569, 0.1875
      %v1602 = vmul.f32 %v1570, 0.1875
      %v1603 = vmul.f32 %v1571, 0.1875
      %v1604 = vmul.f32 %v1572, 0.1875
      %v1605 = vmul.f32 %v1573, 0.1875
      %v1606 = vmul.f32 %v1574, 0.1875
      %v1607 = vmul.f32 %v1575, 0.1875
      %v1608 = vmul.f32 %v1576, 0.1875
      %v1609 = vmul.f32 %v1577, 0.1875
      %v1610 = vmul.f32 %v1578, 0.1875
      %v1611 = vmul.f32 %v1579, 0.1875
      %v1612 = vmul.f32 %v1580, 0.1875
      %v1613 = vmul.f32 %v1581, 0.1875
      %v1614 = vadd.f32 %v1518, %v1582
      %v1615 = vadd.f32 %v1519, %v1583
      %v1616 = vadd.f32 %v1520, %v1584
      %v1617 = vadd.f32 %v1521, %v1585
      %v1618 = vadd.f32 %v1522, %v1586
      %v1619 = vadd.f32 %v1523, %v1587
      %v1620 = vadd.f32 %v1524, %v1588
      %v1621 = vadd.f32 %v1525, %v1589
      %v1622 = vadd.f32 %v1526, %v1590
      %v1623 = vadd.f32 %v1527, %v1591
      %v1624 = vadd.f32 %v1528, %v1592
      %v1625 = vadd.f32 %v1529, %v1593
      %v1626 = vadd.f32 %v1530, %v1594
      %v1627 = vadd.f32 %v1531, %v1595
      %v1628 = vadd.f32 %v1532, %v1596
      %v1629 = vadd.f32 %v1533, %v1597
      %v1630 = vadd.f32 %v1534, %v1598
      %v1631 = vadd.f32 %v1535, %v1599
      %v1632 = vadd.f32 %v1536, %v1600
      %v1633 = vadd.f32 %v1537, %v1601
      %v1634 = vadd.f32 %v1538, %v1602
      %v1635 = vadd.f32 %v1539, %v1603
      %v1636 = vadd.f32 %v1540, %v1604
      %v1637 = vadd.f32 %v1541, %v1605
      %v1638 = vadd.f32 %v1542, %v1606
      %v1639 = vadd.f32 %v1543, %v1607
      %v1640 = vadd.f32 %v1544, %v1608
      %v1641 = vadd.f32 %v1545, %v1609
      %v1642 = vadd.f32 %v1546, %v1610
      %v1643 = vadd.f32 %v1547, %v1611
      %v1644 = vadd.f32 %v1548, %v1612
      %v1645 = vadd.f32 %v1549, %v1613
      %v1646 = vld [vmem:[%s1165 + $0x2] sm:$0xff]
      %v1647 = vld [vmem:[%s1165 + $0xa] sm:$0xff]
      %v1648 = vld [vmem:[%s1165 + $0x1a] sm:$0xff]
      %v1649 = vld [vmem:[%s1165 + $0x22] sm:$0xff]
      %v1650 = vld [vmem:[%s1165 + $0x32] sm:$0xff]
      %v1651 = vld [vmem:[%s1165 + $0x3a] sm:$0xff]
      %v1652 = vld [vmem:[%s1165 + $0x4a] sm:$0xff]
      %v1653 = vld [vmem:[%s1165 + $0x52] sm:$0xff]
      %v1654 = vld [vmem:[%s1165 + $0x62] sm:$0xff]
      %v1655 = vld [vmem:[%s1165 + $0x6a] sm:$0xff]
      %v1656 = vld [vmem:[%s1165 + $0x7a] sm:$0xff]
      %v1657 = vld [vmem:[%s1165 + $0x82] sm:$0xff]
      %v1658 = vld [vmem:[%s1165 + $0x92] sm:$0xff]
      %v1659 = vld [vmem:[%s1165 + $0x9a] sm:$0xff]
      %v1660 = vld [vmem:[%s1165 + $0xaa] sm:$0xff]
      %v1661 = vld [vmem:[%s1165 + $0xb2] sm:$0xff]
      %v1662 = vld [vmem:[%s1165 + $0xc2] sm:$0xff]
      %v1663 = vld [vmem:[%s1165 + $0xca] sm:$0xff]
      %v1664 = vld [vmem:[%s1165 + $0xda] sm:$0xff]
      %v1665 = vld [vmem:[%s1165 + $0xe2] sm:$0xff]
      %v1666 = vld [vmem:[%s1165 + $0xf2] sm:$0xff]
      %v1667 = vld [vmem:[%s1165 + $0xfa] sm:$0xff]
      %v1668 = vld [vmem:[%s1165 + $0x10a] sm:$0xff]
      %v1669 = vld [vmem:[%s1165 + $0x112] sm:$0xff]
      %v1670 = vld [vmem:[%s1165 + $0x122] sm:$0xff]
      %v1671 = vld [vmem:[%s1165 + $0x12a] sm:$0xff]
      %v1672 = vld [vmem:[%s1165 + $0x13a] sm:$0xff]
      %v1673 = vld [vmem:[%s1165 + $0x142] sm:$0xff]
      %v1674 = vld [vmem:[%s1165 + $0x152] sm:$0xff]
      %v1675 = vld [vmem:[%s1165 + $0x15a] sm:$0xff]
      %v1676 = vld [vmem:[%s1165 + $0x16a] sm:$0xff]
      %v1677 = vld [vmem:[%s1165 + $0x172] sm:$0xff]
      %v1678 = vmul.f32 %v1646, 0.0625
      %v1679 = vmul.f32 %v1647, 0.0625
      %v1680 = vmul.f32 %v1648, 0.0625
      %v1681 = vmul.f32 %v1649, 0.0625
      %v1682 = vmul.f32 %v1650, 0.0625
      %v1683 = vmul.f32 %v1651, 0.0625
      %v1684 = vmul.f32 %v1652, 0.0625
      %v1685 = vmul.f32 %v1653, 0.0625
      %v1686 = vmul.f32 %v1654, 0.0625
      %v1687 = vmul.f32 %v1655, 0.0625
      %v1688 = vmul.f32 %v1656, 0.0625
      %v1689 = vmul.f32 %v1657, 0.0625
      %v1690 = vmul.f32 %v1658, 0.0625
      %v1691 = vmul.f32 %v1659, 0.0625
      %v1692 = vmul.f32 %v1660, 0.0625
      %v1693 = vmul.f32 %v1661, 0.0625
      %v1694 = vmul.f32 %v1662, 0.0625
      %v1695 = vmul.f32 %v1663, 0.0625
      %v1696 = vmul.f32 %v1664, 0.0625
      %v1697 = vmul.f32 %v1665, 0.0625
      %v1698 = vmul.f32 %v1666, 0.0625
      %v1699 = vmul.f32 %v1667, 0.0625
      %v1700 = vmul.f32 %v1668, 0.0625
      %v1701 = vmul.f32 %v1669, 0.0625
      %v1702 = vmul.f32 %v1670, 0.0625
      %v1703 = vmul.f32 %v1671, 0.0625
      %v1704 = vmul.f32 %v1672, 0.0625
      %v1705 = vmul.f32 %v1673, 0.0625
      %v1706 = vmul.f32 %v1674, 0.0625
      %v1707 = vmul.f32 %v1675, 0.0625
      %v1708 = vmul.f32 %v1676, 0.0625
      %v1709 = vmul.f32 %v1677, 0.0625
      %v1710 = vadd.f32 %v1614, %v1678
      %v1711 = vadd.f32 %v1615, %v1679
      %v1712 = vadd.f32 %v1616, %v1680
      %v1713 = vadd.f32 %v1617, %v1681
      %v1714 = vadd.f32 %v1618, %v1682
      %v1715 = vadd.f32 %v1619, %v1683
      %v1716 = vadd.f32 %v1620, %v1684
      %v1717 = vadd.f32 %v1621, %v1685
      %v1718 = vadd.f32 %v1622, %v1686
      %v1719 = vadd.f32 %v1623, %v1687
      %v1720 = vadd.f32 %v1624, %v1688
      %v1721 = vadd.f32 %v1625, %v1689
      %v1722 = vadd.f32 %v1626, %v1690
      %v1723 = vadd.f32 %v1627, %v1691
      %v1724 = vadd.f32 %v1628, %v1692
      %v1725 = vadd.f32 %v1629, %v1693
      %v1726 = vadd.f32 %v1630, %v1694
      %v1727 = vadd.f32 %v1631, %v1695
      %v1728 = vadd.f32 %v1632, %v1696
      %v1729 = vadd.f32 %v1633, %v1697
      %v1730 = vadd.f32 %v1634, %v1698
      %v1731 = vadd.f32 %v1635, %v1699
      %v1732 = vadd.f32 %v1636, %v1700
      %v1733 = vadd.f32 %v1637, %v1701
      %v1734 = vadd.f32 %v1638, %v1702
      %v1735 = vadd.f32 %v1639, %v1703
      %v1736 = vadd.f32 %v1640, %v1704
      %v1737 = vadd.f32 %v1641, %v1705
      %v1738 = vadd.f32 %v1642, %v1706
      %v1739 = vadd.f32 %v1643, %v1707
      %v1740 = vadd.f32 %v1644, %v1708
      %v1741 = vadd.f32 %v1645, %v1709
      %1742 = vst.msk [vmem:[%s234] sm:$0xff] %vm588, %v1710
      %1743 = vst.msk [vmem:[%s234 + $0x8] sm:$0xff] %vm588, %v1711
      %1744 = vst.msk [vmem:[%s234 + $0x10] sm:$0xff] %vm588, %v1712
      %1745 = vst.msk [vmem:[%s234 + $0x18] sm:$0xff] %vm588, %v1713
      %1746 = vst.msk [vmem:[%s234 + $0x20] sm:$0xff] %vm588, %v1714
      %1747 = vst.msk [vmem:[%s234 + $0x28] sm:$0xff] %vm588, %v1715
      %1748 = vst.msk [vmem:[%s234 + $0x30] sm:$0xff] %vm588, %v1716
      %1749 = vst.msk [vmem:[%s234 + $0x38] sm:$0xff] %vm588, %v1717
      %1750 = vst.msk [vmem:[%s234 + $0x40] sm:$0xff] %vm588, %v1718
      %1751 = vst.msk [vmem:[%s234 + $0x48] sm:$0xff] %vm588, %v1719
      %1752 = vst.msk [vmem:[%s234 + $0x50] sm:$0xff] %vm588, %v1720
      %1753 = vst.msk [vmem:[%s234 + $0x58] sm:$0xff] %vm588, %v1721
      %1754 = vst.msk [vmem:[%s234 + $0x60] sm:$0xff] %vm588, %v1722
      %1755 = vst.msk [vmem:[%s234 + $0x68] sm:$0xff] %vm588, %v1723
      %1756 = vst.msk [vmem:[%s234 + $0x70] sm:$0xff] %vm588, %v1724
      %1757 = vst.msk [vmem:[%s234 + $0x78] sm:$0xff] %vm588, %v1725
      %1758 = vst.msk [vmem:[%s234 + $0x80] sm:$0xff] %vm588, %v1726
      %1759 = vst.msk [vmem:[%s234 + $0x88] sm:$0xff] %vm588, %v1727
      %1760 = vst.msk [vmem:[%s234 + $0x90] sm:$0xff] %vm588, %v1728
      %1761 = vst.msk [vmem:[%s234 + $0x98] sm:$0xff] %vm588, %v1729
      %1762 = vst.msk [vmem:[%s234 + $0xa0] sm:$0xff] %vm588, %v1730
      %1763 = vst.msk [vmem:[%s234 + $0xa8] sm:$0xff] %vm588, %v1731
      %1764 = vst.msk [vmem:[%s234 + $0xb0] sm:$0xff] %vm588, %v1732
      %1765 = vst.msk [vmem:[%s234 + $0xb8] sm:$0xff] %vm588, %v1733
      %1766 = vst.msk [vmem:[%s234 + $0xc0] sm:$0xff] %vm588, %v1734
      %1767 = vst.msk [vmem:[%s234 + $0xc8] sm:$0xff] %vm588, %v1735
      %1768 = vst.msk [vmem:[%s234 + $0xd0] sm:$0xff] %vm588, %v1736
      %1769 = vst.msk [vmem:[%s234 + $0xd8] sm:$0xff] %vm588, %v1737
      %1770 = vst.msk [vmem:[%s234 + $0xe0] sm:$0xff] %vm588, %v1738
      %1771 = vst.msk [vmem:[%s234 + $0xe8] sm:$0xff] %vm588, %v1739
      %1772 = vst.msk [vmem:[%s234 + $0xf0] sm:$0xff] %vm588, %v1740
      %1773 = vst.msk [vmem:[%s234 + $0xf8] sm:$0xff] %vm588, %v1741
      %p1774 = scmp.lt.s32.totalorder %s16, 1
      %s1775 = scalar_select %p1774, %s16, 1
      %s1776 = smul.addr %s1775, 32
      %s1777 = smul.addr %s1776, 8
      %s1778 = scalar_lea.vmem %s1, %s1777
      %p1779 = scmp.lt.s32.totalorder %s16, 1
      %s1780 = scalar_select %p1779, %s16, 1
      %s1781 = smul.addr %s1780, 32
      %s1782 = smul.addr %s1781, 8
      %s1783 = scalar_lea.vmem %s2, %s1782
      %p1784 = scmp.lt.s32.totalorder %s16, 1
      %s1785 = scalar_select %p1784, %s16, 1
      %s1786 = smul.addr %s1785, 32
      %s1787 = smul.addr %s1786, 8
      %s1788 = scalar_lea.vmem %s3, %s1787
      %p1789 = scmp.lt.s32.totalorder %s16, 1
      %s1790 = scalar_select %p1789, %s16, 1
      %s1791 = smul.addr %s1790, 32
      %s1792 = smul.addr %s1791, 8
      %s1793 = scalar_lea.vmem %s4, %s1792
      // Predicated region
      $region25: #{keypoint_outputs_forward.3} parent=23 // pred_check
        %p1794 = pneg %p60
      $region26: #{keypoint_outputs_forward.3} parent=23 // pred_check_branch
        %1796 = sbr.rel (%p1794) target = $region28
      $region27: #{keypoint_outputs_forward.3} parent=23 // pred_region
        _
      $region28: #{keypoint_outputs_forward.3} parent=23 // pred_fallthru
        _
      // Predicated region
      $region29: #{keypoint_outputs_forward.3} parent=23 // pred_check
        %p1797 = pneg %p86
      $region30: #{keypoint_outputs_forward.3} parent=23 // pred_check_branch
        %1799 = sbr.rel (%p1797) target = $region32
      $region31: #{keypoint_outputs_forward.3} parent=23 // pred_region
        _
      $region32: #{keypoint_outputs_forward.3} parent=23 // pred_fallthru
        _
      // Predicated region
      $region33: #{keypoint_outputs_forward.3} parent=23 // pred_check
        %p1800 = pneg %p112
      $region34: #{keypoint_outputs_forward.3} parent=23 // pred_check_branch
        %1802 = sbr.rel (%p1800) target = $region36
      $region35: #{keypoint_outputs_forward.3} parent=23 // pred_region
        _
      $region36: #{keypoint_outputs_forward.3} parent=23 // pred_fallthru
        _
      // Predicated region
      $region37: #{keypoint_outputs_forward.3} parent=23 // pred_check
        %p1803 = pneg %p138
      $region38: #{keypoint_outputs_forward.3} parent=23 // pred_check_branch
        %1805 = sbr.rel (%p1803) target = $region40
      $region39: #{keypoint_outputs_forward.3} parent=23 // pred_region
        _
      $region40: #{keypoint_outputs_forward.3} parent=23 // pred_fallthru
        _
    $region24: #{keypoint_outputs_forward.3} parent=5 // pred_fallthru
      _
    %p1806 = scmp.le.s32.totalorder 2, %s11
    // Predicated region
    $region41: #{keypoint_outputs_forward.3} parent=5 // pred_check
      %p1807 = pneg %p1806
    $region42: #{keypoint_outputs_forward.3} parent=5 // pred_check_branch
      %1809 = sbr.rel (%p1807) target = $region44
    $region43: #{keypoint_outputs_forward.3} parent=5 // pred_region
      %s1810 = ssub.s32 %s11, 2
      // Predicated region
      $region45: #{keypoint_outputs_forward.3} parent=43 // pred_check
        %p1811 = pneg %p66
      $region46: #{keypoint_outputs_forward.3} parent=43 // pred_check_branch
        %1813 = sbr.rel (%p1811) target = $region48
      $region47: #{keypoint_outputs_forward.3} parent=43 // pred_region
        %p1814 = scmp.lt.s32.totalorder %s17, 1
        %s1815 = scalar_select %p1814, %s17, 1
        %s1816 = smul.addr %s1815, 32
        %s1817 = smul.addr %s1816, 8
        %s1818 = scalar_lea.vmem %s1, %s1817
      $region48: #{keypoint_outputs_forward.3} parent=43 // pred_fallthru
        _
      // Predicated region
      $region49: #{keypoint_outputs_forward.3} parent=43 // pred_check
        %p1819 = pneg %p92
      $region50: #{keypoint_outputs_forward.3} parent=43 // pred_check_branch
        %1821 = sbr.rel (%p1819) target = $region52
      $region51: #{keypoint_outputs_forward.3} parent=43 // pred_region
        %p1822 = scmp.lt.s32.totalorder %s17, 1
        %s1823 = scalar_select %p1822, %s17, 1
        %s1824 = smul.addr %s1823, 32
        %s1825 = smul.addr %s1824, 8
        %s1826 = scalar_lea.vmem %s2, %s1825
      $region52: #{keypoint_outputs_forward.3} parent=43 // pred_fallthru
        _
      // Predicated region
      $region53: #{keypoint_outputs_forward.3} parent=43 // pred_check
        %p1827 = pneg %p118
      $region54: #{keypoint_outputs_forward.3} parent=43 // pred_check_branch
        %1829 = sbr.rel (%p1827) target = $region56
      $region55: #{keypoint_outputs_forward.3} parent=43 // pred_region
        %p1830 = scmp.lt.s32.totalorder %s17, 1
        %s1831 = scalar_select %p1830, %s17, 1
        %s1832 = smul.addr %s1831, 32
        %s1833 = smul.addr %s1832, 8
        %s1834 = scalar_lea.vmem %s3, %s1833
      $region56: #{keypoint_outputs_forward.3} parent=43 // pred_fallthru
        _
      // Predicated region
      $region57: #{keypoint_outputs_forward.3} parent=43 // pred_check
        %p1835 = pneg %p144
      $region58: #{keypoint_outputs_forward.3} parent=43 // pred_check_branch
        %1837 = sbr.rel (%p1835) target = $region60
      $region59: #{keypoint_outputs_forward.3} parent=43 // pred_region
        %p1838 = scmp.lt.s32.totalorder %s17, 1
        %s1839 = scalar_select %p1838, %s17, 1
        %s1840 = smul.addr %s1839, 32
        %s1841 = smul.addr %s1840, 8
        %s1842 = scalar_lea.vmem %s4, %s1841
      $region60: #{keypoint_outputs_forward.3} parent=43 // pred_fallthru
        _
    $region44: #{keypoint_outputs_forward.3} parent=5 // pred_fallthru
      _
  $region6: #{keypoint_outputs_forward.3} parent=0 // loop_footer
    %s15 = sadd.s32 1, %s11
  $region7: #{keypoint_outputs_forward.3} parent=0 // loop_footer_branch
    %10 = sbr.rel target = $region3
  $region8: #{keypoint_outputs_forward.3} parent=0 // loop_exit
    _

</llo_original>
